<compile_context>
chip_gen: v7x
topology: tpu7x:2x2x1
jax: 0.10.0
libtpu: 0.0.40
codegen_flags: <defaults>
</compile_context>

<pallas_src>
import math
import jax
import jax.numpy as jnp
from jax import lax
from jax.experimental import pallas as pl
from jax.experimental.pallas import tpu as pltpu

# ----------------------------------------------------------------------------
# Small deterministic configuration consistent with the module's forward.
# ----------------------------------------------------------------------------
BATCH = 2
IMG_SIZE = 32           # x: (B, 3, 32, 32)
BASE_WIDTH = 8          # width-scaled ResNet-18; d_model = 8 * BASE_WIDTH
NUM_CONCEPTS = 6
HIDDEN_DIM = 16
N_SAMPLES = 7           # n_samples_inference (module default)
D_MODEL = BASE_WIDTH * 8
CH = NUM_CONCEPTS * HIDDEN_DIM      # 96  (real per-head width)
CHP = 128                           # per-head width padded to one full lane tile
SMALL_W = 128                       # packed [logit|prob|uncertainty] slab width
BN_SCALE = 1.0 / math.sqrt(1.0 + 1e-5)   # eval-mode BN (gamma=1, beta=0, mean=0, var=1)


# ----------------------------------------------------------------------------
# Plain-JAX glue: ConceptConvModelBase.forward_basic (ResNet-18-like backbone)
# NHWC layout, BN folded into conv weights at init time.
# ----------------------------------------------------------------------------
def _conv(x, w, stride, pad):
    return lax.conv_general_dilated(
        x, w, window_strides=(stride, stride),
        padding=[(pad, pad), (pad, pad)],
        dimension_numbers=("NHWC", "HWIO", "NHWC"))


def _relu(x):
    return jnp.maximum(x, 0.0)


def _maxpool_3x3_s2(x):
    return lax.reduce_window(
        x, -jnp.inf, lax.max,
        window_dimensions=(1, 3, 3, 1), window_strides=(1, 2, 2, 1),
        padding=[(0, 0), (1, 1), (1, 1), (0, 0)])


def _basic_block(x, blk, stride):
    out = _relu(_conv(x, blk["conv1"], stride, 1))       # conv+bn(folded)+relu
    out = _conv(out, blk["conv2"], 1, 1)                 # conv+bn(folded)
    identity = _conv(x, blk["down"], stride, 0) if "down" in blk else x
    return _relu(out + identity)


def forward_basic(x_nchw, bb):
    x = jnp.transpose(x_nchw, (0, 2, 3, 1))              # NCHW -> NHWC once
    x = _relu(_conv(x, bb["conv1"], 2, 3))               # conv1 7x7/2 + bn + relu
    x = _maxpool_3x3_s2(x)                               # maxpool 3x3/2
    for li, blocks in enumerate(bb["layers"]):           # layer1..layer4 (2 blocks each)
        for bi, blk in enumerate(blocks):
            stride = 2 if (li > 0 and bi == 0) else 1
            x = _basic_block(x, blk, stride)
    return jnp.mean(x, axis=(1, 2))                      # AdaptiveAvgPool2d(1) -> (B, d_model)


# ----------------------------------------------------------------------------
# Fused Pallas kernel: fused mean|logsigma head (3 matmuls) + F.normalize + clip
# + Gaussian sampling (noise passed in lane-dense) + batchwise_cdist + match_prob
# + get_uncertainty.  Single grid-less program, everything in VMEM, all
# intermediates lane-dense at 128/256 lanes.
# ----------------------------------------------------------------------------
def _fused_kernel(ns_ref, sh_ref, f_ref, w1_ref, w23_ref, bs_ref,
                  ind_ref, indb_ref, cvec_ref, noise_ref,
                  stats_ref, emb_ref, small_ref):
    B = f_ref.shape[0]
    C, H, S = NUM_CONCEPTS, HIDDEN_DIM, N_SAMPLES

    f = f_ref[...]                                       # (B, D)
    b1 = bs_ref[0:1, :]                                  # (1, 2*CHP)
    b2 = bs_ref[1:2, :]
    b3 = bs_ref[2:3, :]
    slope = bs_ref[3:4, :]                               # 0.0 on mean lanes, 0.01 on logsigma lanes

    def act(v):                                          # ReLU | LeakyReLU(0.01), per lane
        return jnp.where(v >= 0.0, v, v * slope)

    # Fused mean|logsigma head: Conv1x1 stacks become 3 chained matmuls.
    h = act(jnp.dot(f, w1_ref[...], preferred_element_type=jnp.float32) + b1)
    h = act(jnp.dot(h, w23_ref[0], preferred_element_type=jnp.float32) + b2)
    h = jnp.dot(h, w23_ref[1], preferred_element_type=jnp.float32) + b3    # (B, 2*CHP)

    m = h[:, :CHP]                                       # raw mean, lane-dense (B, CHP)
    s = jnp.minimum(h[:, CHP:], 10.0)                    # torch.clip(logsigma, max=10)

    ind = ind_ref[...]                                   # (CHP, C) block indicator (pad rows zero)
    indb = indb_ref[...]                                 # (C, CHP) broadcast indicator

    # F.normalize(mean, p=2, dim=-1): per-concept H-reduction as an MXU matmul.
    msq = jnp.dot(m * m, ind, preferred_element_type=jnp.float32)          # (B, C)
    inv = lax.rsqrt(jnp.maximum(msq, 1e-24))             # == 1 / max(||m||, 1e-12)
    m = m * jnp.dot(inv, indb, preferred_element_type=jnp.float32)         # (B, CHP)

    # Packed lane-dense stats output: [mean | logsigma] (single unmasked store).
    stats_ref[...] = jnp.concatenate([m, s], axis=-1)

    # sample_gaussian_tensors: mu + eps * exp(logsigma); eps is lane-dense (S*B, CHP).
    sig = jnp.exp(s)
    m_rep = jnp.concatenate([m] * S, axis=0)             # (S*B, CHP), rows ordered (s, b)
    sig_rep = jnp.concatenate([sig] * S, axis=0)
    emb = m_rep + noise_ref[...] * sig_rep
    emb_ref[...] = emb                                   # lane-dense embeddings output

    # batchwise_cdist vs the (pre-normalized) per-concept concept embedding.
    diff = emb - cvec_ref[...]                           # cvec (1, CHP) broadcasts over rows
    dsq = jnp.dot(diff * diff, ind, preferred_element_type=jnp.float32)    # (S*B, C)
    dist = jnp.sqrt(dsq + 1e-6)                          # batchwise_cdist eps

    ns = ns_ref[0]
    sh = sh_ref[0]
    logits = -ns * dist + sh                             # (S*B, C)
    # exp(l)/(exp(l)+exp(-l)) == 1/(1+exp(-2l)); one exp, overflow-safe.
    prob = 1.0 / (1.0 + jnp.exp(-2.0 * logits))

    def mean_over_samples(v):                            # (S*B, C) -> (B, C)
        acc = v[0:B, :]
        for si in range(1, S):
            acc = acc + v[si * B:(si + 1) * B, :]
        return acc * (1.0 / S)

    logit_bc = mean_over_samples(logits)                 # match_prob: logits.mean(-1)
    prob_bc = mean_over_samples(prob)                    # match_prob: prob.mean(-1)

    # get_uncertainty: exp(mean(logsigma, dim=-1)) via the same indicator matmul.
    unc = jnp.exp(jnp.dot(s, ind, preferred_element_type=jnp.float32) * (1.0 / H))

    # Packed lane-dense small-outputs slab: [logit | prob | uncertainty | zeros].
    pad = jnp.zeros((B, SMALL_W - 3 * C), jnp.float32)
    small_ref[...] = jnp.concatenate([logit_bc, prob_bc, unc, pad], axis=-1)


def fused_concept_forward(feature, fused_head, ind, ind_b, cvec_flat,
                          negative_scale, shift, noise):
    B = feature.shape[0]
    S = N_SAMPLES
    w1, w23, bias_slope = fused_head
    vmem = pl.BlockSpec(memory_space=pltpu.MemorySpace.VMEM)
    smem = pl.BlockSpec(memory_space=pltpu.MemorySpace.SMEM)

    return pl.pallas_call(
        _fused_kernel,
        in_specs=[smem, smem] + [vmem] * 8,
        out_specs=(vmem, vmem, vmem),
        out_shape=(
            jax.ShapeDtypeStruct((B, 2 * CHP), jnp.float32),    # [mean | logsigma]
            jax.ShapeDtypeStruct((S * B, CHP), jnp.float32),    # sampled embeddings
            jax.ShapeDtypeStruct((B, SMALL_W), jnp.float32),    # [logit | prob | uncertainty]
        ),
    )(negative_scale, shift, feature, w1, w23, bias_slope, ind, ind_b, cvec_flat, noise)


# ----------------------------------------------------------------------------
# Deterministic parameter initialization (synthetic; no checkpoint loading)
# ----------------------------------------------------------------------------
def _uniform(key, shape, fan_in):
    bound = 1.0 / math.sqrt(fan_in)
    return jax.random.uniform(key, shape, jnp.float32, -bound, bound)


def init_backbone(key, base):
    keys = iter(jax.random.split(key, 32))

    def conv_w(out_c, in_c, k):
        w = _uniform(next(keys), (out_c, in_c, k, k), in_c * k * k)   # OIHW
        # fold eval-mode BN scale, convert OIHW -> HWIO (NHWC conv)
        return jnp.transpose(w, (2, 3, 1, 0)) * BN_SCALE

    bb = {"conv1": conv_w(base, 3, 7), "layers": []}
    in_c = base
    for li, width in enumerate([base, base * 2, base * 4, base * 8]):
        blocks = []
        for bi in range(2):
            stride = 2 if (li > 0 and bi == 0) else 1
            blk = {"conv1": conv_w(width, in_c, 3),
                   "conv2": conv_w(width, width, 3)}
            if stride != 1 or in_c != width:
                blk["down"] = conv_w(width, in_c, 1)
            blocks.append(blk)
            in_c = width
        bb["layers"].append(blocks)
    return bb


def init_head(key, C, H, D):
    """Raw per-concept weights (same shapes/fan-in as the PyTorch conv stack)."""
    ks = jax.random.split(key, 6)
    return (_uniform(ks[0], (C, H, D), D), _uniform(ks[1], (C, H), D),
            _uniform(ks[2], (C, H, H), H), _uniform(ks[3], (C, H), H),
            _uniform(ks[4], (C, H, H), H), _uniform(ks[5], (C, H), H))


def _block_diag(w):
    """(C, H_out, H_in) grouped 1x1-conv weight -> (C*H_in, C*H_out) block-diagonal
    matrix BD such that h_out = h_in @ BD (per concept: h_c @ w_c^T)."""
    C, Ho, Hi = w.shape
    eye = jnp.eye(C, dtype=w.dtype)
    return jnp.einsum("cd,cji->cidj", eye, w).reshape(C * Hi, C * Ho)


def _pad_cols(a, width):
    return jnp.pad(a, ((0, 0), (0, width - a.shape[1])))


def prepare_fused_head(mean_raw, logsigma_raw):
    """Pack both heads into one matmul-ready chain, padded to 128/256 lanes.
    Done once at init: zero in-kernel cost."""
    C, H, D = mean_raw[0].shape
    w1m, b1m, w2m, b2m, w3m, b3m = mean_raw
    w1s, b1s, w2s, b2s, w3s, b3s = logsigma_raw

    def layer1(w):      # (C,H,D) -> (D, CHP)
        return _pad_cols(w.reshape(C * H, D).T, CHP)

    def grouped(w):     # (C,H,H) -> (CHP, CHP) block-diagonal, zero-padded
        bd = _block_diag(w)
        return jnp.pad(bd, ((0, CHP - C * H), (0, CHP - C * H)))

    def bias(b):        # (C,H) -> (1, CHP)
        return _pad_cols(b.reshape(1, C * H), CHP)

    zero = jnp.zeros((CHP, CHP), jnp.float32)
    w1 = jnp.concatenate([layer1(w1m), layer1(w1s)], axis=1)             # (D, 2*CHP)
    w2 = jnp.concatenate([jnp.concatenate([grouped(w2m), zero], axis=1),
                          jnp.concatenate([zero, grouped(w2s)], axis=1)], axis=0)
    w3 = jnp.concatenate([jnp.concatenate([grouped(w3m), zero], axis=1),
                          jnp.concatenate([zero, grouped(w3s)], axis=1)], axis=0)
    w23 = jnp.stack([w2, w3], axis=0)                                    # (2, 2*CHP, 2*CHP)

    slope = jnp.concatenate([jnp.zeros((1, CHP), jnp.float32),           # ReLU half
                             jnp.full((1, CHP), 0.01, jnp.float32)],     # LeakyReLU half
                            axis=1)
    bias_slope = jnp.concatenate([
        jnp.concatenate([bias(b1m), bias(b1s)], axis=1),
        jnp.concatenate([bias(b2m), bias(b2s)], axis=1),
        jnp.concatenate([bias(b3m), bias(b3s)], axis=1),
        slope], axis=0).astype(jnp.float32)                              # (4, 2*CHP)
    return w1, w23, bias_slope


def make_indicators(C, H):
    """(CHP, C) block-indicator for per-concept H-reductions and its (C, CHP)
    transpose for per-concept broadcast; pad rows/cols are zero."""
    rows = jnp.arange(CHP)[:, None]
    cols = jnp.arange(C)[None, :]
    ind = (((rows // H) == cols) & (rows < C * H)).astype(jnp.float32)
    return ind, ind.T


def init_params(key):
    kb, km, ks, kc = jax.random.split(key, 4)
    mean_raw = init_head(km, NUM_CONCEPTS, HIDDEN_DIM, D_MODEL)
    logsigma_raw = init_head(ks, NUM_CONCEPTS, HIDDEN_DIM, D_MODEL)
    ind, ind_b = make_indicators(NUM_CONCEPTS, HIDDEN_DIM)
    return {
        "backbone": init_backbone(kb, BASE_WIDTH),
        "fused_head": prepare_fused_head(mean_raw, logsigma_raw),
        "ind": ind, "ind_b": ind_b,
        # concept_vectors: trunc_normal_(std=1/sqrt(hidden_dim)), shape (1, C, H)
        "concept_vectors": (jax.random.truncated_normal(
            kc, -2.0, 2.0, (1, NUM_CONCEPTS, HIDDEN_DIM), jnp.float32)
            * (1.0 / math.sqrt(HIDDEN_DIM))),
        "negative_scale": jnp.ones((1,), jnp.float32),   # init_negative_scale = 1
        "shift": jnp.zeros((1,), jnp.float32),           # init_shift = 0
    }


# ----------------------------------------------------------------------------
# ProbConceptModel.forward
# ----------------------------------------------------------------------------
def prob_concept_forward(params, x, noise_key):
    B = x.shape[0]
    C, H, S = NUM_CONCEPTS, HIDDEN_DIM, N_SAMPLES

    feature = forward_basic(x, params["backbone"])                       # (B, d_model)

    # concept_mean = F.normalize(concept_vectors, dim=-1): input-independent,
    # done outside the kernel (drops one DMA + one XLU reduce from the hot path).
    cv = params["concept_vectors"]                                       # (1, C, H)
    concept_mean = cv * lax.rsqrt(jnp.maximum(jnp.sum(cv * cv, -1, keepdims=True), 1e-24))
    cvec_flat = _pad_cols(concept_mean[0].reshape(1, C * H), CHP)        # (1, CHP)

    # TODO(synk): torch.randn stream cannot be reproduced; statistically-equivalent
    # lane-dense standard-normal noise generated here and fed to the kernel.
    noise = jax.random.normal(noise_key, (S * B, CHP), jnp.float32)

    stats, emb_flat, small = fused_concept_forward(
        feature, params["fused_head"], params["ind"], params["ind_b"],
        cvec_flat, params["negative_scale"], params["shift"], noise)

    # Wrapper-side layout plumbing (free XLA reshapes) back to module shapes.
    pred_mean = stats[:, :C * H].reshape(B, C, H)
    pred_logsigma = stats[:, CHP:CHP + C * H].reshape(B, C, H)
    pred_embeddings = emb_flat[:, :C * H].reshape(S, B, C, H).transpose(1, 2, 0, 3)
    concept_logit = small[:, :C]
    concept_prob = small[:, C:2 * C]
    concept_uncertainty = small[:, 2 * C:3 * C]

    # use_neg_concept=False and concept_pos_idx defaults to zeros -> else-branch.
    # TODO(synk): `self.concept_pos_idx` and `concept_logsigma` are referenced in
    # the PyTorch forward but never defined in the provided __init__.
    out_concept_prob = concept_prob

    out_dict = {
        "pred_concept_prob": out_concept_prob,                    # (B, C)
        "pred_concept_uncertainty": concept_uncertainty,          # (B, C)
        "pred_concept_logit": concept_logit,                      # (B, C)
        "pred_embeddings": pred_embeddings,                       # (B, C, S, H)
        "concept_embeddings": concept_mean[:, :, None, :],        # (1, C, 1, H)
        "pred_mean": pred_mean,                                   # (B, C, H)
        "pred_logsigma": pred_logsigma,                           # (B, C, H)
        "concept_mean": concept_mean,                             # (1, C, H)
        "concept_logsigma": None,
        "shift": params["shift"],
        "negative_scale": params["negative_scale"],
        "pred_embeddings_detach": lax.stop_gradient(pred_embeddings),
        "concept_pos_idx": jnp.zeros((NUM_CONCEPTS,), jnp.int32),
    }
    # pred_class=False (default) -> no classification head.
    return out_dict, {}


if __name__ == "__main__":
    key = jax.random.PRNGKey(0)
    kp, kx, kn = jax.random.split(key, 3)
    params = init_params(kp)
    x = jax.random.normal(kx, (BATCH, 3, IMG_SIZE, IMG_SIZE), jnp.float32)

    forward = jax.jit(prob_concept_forward)
    out_dict, _ = forward(params, x, kn)
    jax.block_until_ready(out_dict)

    assert out_dict["pred_concept_prob"].shape == (BATCH, NUM_CONCEPTS)
    assert out_dict["pred_concept_logit"].shape == (BATCH, NUM_CONCEPTS)
    assert out_dict["pred_concept_uncertainty"].shape == (BATCH, NUM_CONCEPTS)
    assert out_dict["pred_embeddings"].shape == (BATCH, NUM_CONCEPTS, N_SAMPLES, HIDDEN_DIM)
    assert out_dict["pred_mean"].shape == (BATCH, NUM_CONCEPTS, HIDDEN_DIM)
    assert out_dict["pred_logsigma"].shape == (BATCH, NUM_CONCEPTS, HIDDEN_DIM)
    assert out_dict["concept_mean"].shape == (1, NUM_CONCEPTS, HIDDEN_DIM)
    assert bool(jnp.all(jnp.isfinite(out_dict["pred_concept_prob"])))
    assert bool(jnp.all(jnp.isfinite(out_dict["pred_embeddings"])))
    # F.normalize check: per-concept mean embeddings are unit-norm
    norms = jnp.sqrt(jnp.sum(out_dict["pred_mean"] ** 2, axis=-1))
    assert bool(jnp.all(jnp.abs(norms - 1.0) < 1e-3))
    print("KERNEL_OK")
</pallas_src>

<mosaic_0001>
module attributes {stable_mosaic.version = 11 : i64} {
  func.func @_fused_kernel(%arg0: memref<1xf32, #tpu.memory_space<smem>>, %arg1: memref<1xf32, #tpu.memory_space<smem>>, %arg2: memref<2x64xf32, #tpu.memory_space<vmem>>, %arg3: memref<64x256xf32, #tpu.memory_space<vmem>>, %arg4: memref<2x256x256xf32, #tpu.memory_space<vmem>>, %arg5: memref<4x256xf32, #tpu.memory_space<vmem>>, %arg6: memref<128x6xf32, #tpu.memory_space<vmem>>, %arg7: memref<6x128xf32, #tpu.memory_space<vmem>>, %arg8: memref<1x128xf32, #tpu.memory_space<vmem>>, %arg9: memref<14x128xf32, #tpu.memory_space<vmem>>, %arg10: memref<2x256xf32, #tpu.memory_space<vmem>>, %arg11: memref<14x128xf32, #tpu.memory_space<vmem>>, %arg12: memref<2x128xf32, #tpu.memory_space<vmem>>) attributes {dimension_semantics = [], scalar_prefetch = 0 : i64, scratch_operands = 0 : i64, tpu.core_type = #tpu.core_type<tc>} {
    %c0 = arith.constant 0 : index
    %c0_0 = arith.constant 0 : index
    %0 = vector.load %arg2[%c0, %c0_0] : memref<2x64xf32, #tpu.memory_space<vmem>>, vector<2x64xf32>
    %c0_1 = arith.constant 0 : index
    %c0_2 = arith.constant 0 : index
    %1 = vector.load %arg5[%c0_1, %c0_2] : memref<4x256xf32, #tpu.memory_space<vmem>>, vector<1x256xf32>
    %c1 = arith.constant 1 : index
    %c0_3 = arith.constant 0 : index
    %2 = vector.load %arg5[%c1, %c0_3] : memref<4x256xf32, #tpu.memory_space<vmem>>, vector<1x256xf32>
    %c2 = arith.constant 2 : index
    %c0_4 = arith.constant 0 : index
    %3 = vector.load %arg5[%c2, %c0_4] : memref<4x256xf32, #tpu.memory_space<vmem>>, vector<1x256xf32>
    %c3 = arith.constant 3 : index
    %c0_5 = arith.constant 0 : index
    %4 = vector.load %arg5[%c3, %c0_5] : memref<4x256xf32, #tpu.memory_space<vmem>>, vector<1x256xf32>
    %c0_6 = arith.constant 0 : index
    %c0_7 = arith.constant 0 : index
    %5 = vector.load %arg3[%c0_6, %c0_7] : memref<64x256xf32, #tpu.memory_space<vmem>>, vector<64x256xf32>
    %cst = arith.constant dense<0.000000e+00> : vector<2x256xf32>
    %6 = tpu.matmul %0, %5, %cst {dimension_numbers = #tpu.dot_dimension_numbers<[1], [0], [0], [1], [0, 0, 1, 1], [], []>} : vector<2x64xf32>, vector<64x256xf32>, vector<2x256xf32> -> vector<2x256xf32>
    %7 = vector.broadcast %1 : vector<1x256xf32> to vector<2x256xf32>
    %8 = arith.addf %6, %7 : vector<2x256xf32>
    %cst_8 = arith.constant 0.000000e+00 : f32
    %9 = vector.broadcast %cst_8 : f32 to vector<2x256xf32>
    %10 = arith.cmpf oge, %8, %9 : vector<2x256xf32>
    %11 = vector.broadcast %4 : vector<1x256xf32> to vector<2x256xf32>
    %12 = arith.mulf %8, %11 : vector<2x256xf32>
    %13 = arith.select %10, %8, %12 : vector<2x256xi1>, vector<2x256xf32>
    %c0_9 = arith.constant 0 : index
    %c0_10 = arith.constant 0 : index
    %c0_11 = arith.constant 0 : index
    %14 = vector.load %arg4[%c0_9, %c0_10, %c0_11] : memref<2x256x256xf32, #tpu.memory_space<vmem>>, vector<1x256x256xf32>
    %15 = vector.shape_cast %14 : vector<1x256x256xf32> to vector<256x256xf32>
    %cst_12 = arith.constant dense<0.000000e+00> : vector<2x256xf32>
    %16 = tpu.matmul %13, %15, %cst_12 {dimension_numbers = #tpu.dot_dimension_numbers<[1], [0], [0], [1], [0, 0, 1, 1], [], []>} : vector<2x256xf32>, vector<256x256xf32>, vector<2x256xf32> -> vector<2x256xf32>
    %17 = vector.broadcast %2 : vector<1x256xf32> to vector<2x256xf32>
    %18 = arith.addf %16, %17 : vector<2x256xf32>
    %cst_13 = arith.constant 0.000000e+00 : f32
    %19 = vector.broadcast %cst_13 : f32 to vector<2x256xf32>
    %20 = arith.cmpf oge, %18, %19 : vector<2x256xf32>
    %21 = vector.broadcast %4 : vector<1x256xf32> to vector<2x256xf32>
    %22 = arith.mulf %18, %21 : vector<2x256xf32>
    %23 = arith.select %20, %18, %22 : vector<2x256xi1>, vector<2x256xf32>
    %c1_14 = arith.constant 1 : index
    %c0_15 = arith.constant 0 : index
    %c0_16 = arith.constant 0 : index
    %24 = vector.load %arg4[%c1_14, %c0_15, %c0_16] : memref<2x256x256xf32, #tpu.memory_space<vmem>>, vector<1x256x256xf32>
    %25 = vector.shape_cast %24 : vector<1x256x256xf32> to vector<256x256xf32>
    %cst_17 = arith.constant dense<0.000000e+00> : vector<2x256xf32>
    %26 = tpu.matmul %23, %25, %cst_17 {dimension_numbers = #tpu.dot_dimension_numbers<[1], [0], [0], [1], [0, 0, 1, 1], [], []>} : vector<2x256xf32>, vector<256x256xf32>, vector<2x256xf32> -> vector<2x256xf32>
    %27 = vector.broadcast %3 : vector<1x256xf32> to vector<2x256xf32>
    %28 = arith.addf %26, %27 : vector<2x256xf32>
    %29 = vector.extract_strided_slice %28 {offsets = [0, 0], sizes = [2, 128], strides = [1, 1]} : vector<2x256xf32> to vector<2x128xf32>
    %30 = vector.extract_strided_slice %28 {offsets = [0, 128], sizes = [2, 128], strides = [1, 1]} : vector<2x256xf32> to vector<2x128xf32>
    %cst_18 = arith.constant 1.000000e+01 : f32
    %31 = vector.broadcast %cst_18 : f32 to vector<2x128xf32>
    %32 = arith.minimumf %30, %31 : vector<2x128xf32>
    %c0_19 = arith.constant 0 : index
    %c0_20 = arith.constant 0 : index
    %33 = vector.load %arg6[%c0_19, %c0_20] : memref<128x6xf32, #tpu.memory_space<vmem>>, vector<128x6xf32>
    %c0_21 = arith.constant 0 : index
    %c0_22 = arith.constant 0 : index
    %34 = vector.load %arg7[%c0_21, %c0_22] : memref<6x128xf32, #tpu.memory_space<vmem>>, vector<6x128xf32>
    %35 = arith.mulf %29, %29 : vector<2x128xf32>
    %cst_23 = arith.constant dense<0.000000e+00> : vector<2x6xf32>
    %36 = tpu.matmul %35, %33, %cst_23 {dimension_numbers = #tpu.dot_dimension_numbers<[1], [0], [0], [1], [0, 0, 1, 1], [], []>} : vector<2x128xf32>, vector<128x6xf32>, vector<2x6xf32> -> vector<2x6xf32>
    %cst_24 = arith.constant 1.000000e-24 : f32
    %37 = vector.broadcast %cst_24 : f32 to vector<2x6xf32>
    %38 = arith.maximumf %36, %37 : vector<2x6xf32>
    %39 = math.rsqrt %38 : vector<2x6xf32>
    %cst_25 = arith.constant dense<0.000000e+00> : vector<2x128xf32>
    %40 = tpu.matmul %39, %34, %cst_25 {dimension_numbers = #tpu.dot_dimension_numbers<[1], [0], [0], [1], [0, 0, 1, 1], [], []>} : vector<2x6xf32>, vector<6x128xf32>, vector<2x128xf32> -> vector<2x128xf32>
    %41 = arith.mulf %29, %40 : vector<2x128xf32>
    %42 = tpu.concatenate %41, %32 in 1 : vector<2x128xf32>, vector<2x128xf32> -> vector<2x256xf32>
    %c0_26 = arith.constant 0 : index
    %c0_27 = arith.constant 0 : index
    %43 = vector.load %arg10[%c0_26, %c0_27] : memref<2x256xf32, #tpu.memory_space<vmem>>, vector<2x256xf32>
    tpu.vector_store %arg10[%c0_26, %c0_27], %42 {strides = array<i32>} : memref<2x256xf32, #tpu.memory_space<vmem>>, vector<2x256xf32>,
    %44 = math.exp %32 : vector<2x128xf32>
    %45 = tpu.concatenate %41, %41, %41, %41, %41, %41, %41 in 0 : vector<2x128xf32>, vector<2x128xf32>, vector<2x128xf32>, vector<2x128xf32>, vector<2x128xf32>, vector<2x128xf32>, vector<2x128xf32> -> vector<14x128xf32>
    %46 = tpu.concatenate %44, %44, %44, %44, %44, %44, %44 in 0 : vector<2x128xf32>, vector<2x128xf32>, vector<2x128xf32>, vector<2x128xf32>, vector<2x128xf32>, vector<2x128xf32>, vector<2x128xf32> -> vector<14x128xf32>
    %c0_28 = arith.constant 0 : index
    %c0_29 = arith.constant 0 : index
    %47 = vector.load %arg9[%c0_28, %c0_29] : memref<14x128xf32, #tpu.memory_space<vmem>>, vector<14x128xf32>
    %48 = arith.mulf %47, %46 : vector<14x128xf32>
    %49 = arith.addf %45, %48 : vector<14x128xf32>
    %c0_30 = arith.constant 0 : index
    %c0_31 = arith.constant 0 : index
    %50 = vector.load %arg11[%c0_30, %c0_31] : memref<14x128xf32, #tpu.memory_space<vmem>>, vector<14x128xf32>
    tpu.vector_store %arg11[%c0_30, %c0_31], %49 {strides = array<i32>} : memref<14x128xf32, #tpu.memory_space<vmem>>, vector<14x128xf32>,
    %c0_32 = arith.constant 0 : index
    %c0_33 = arith.constant 0 : index
    %51 = vector.load %arg8[%c0_32, %c0_33] : memref<1x128xf32, #tpu.memory_space<vmem>>, vector<1x128xf32>
    %52 = vector.broadcast %51 : vector<1x128xf32> to vector<14x128xf32>
    %53 = arith.subf %49, %52 : vector<14x128xf32>
    %54 = arith.mulf %53, %53 : vector<14x128xf32>
    %cst_34 = arith.constant dense<0.000000e+00> : vector<14x6xf32>
    %55 = tpu.matmul %54, %33, %cst_34 {dimension_numbers = #tpu.dot_dimension_numbers<[1], [0], [0], [1], [0, 0, 1, 1], [], []>} : vector<14x128xf32>, vector<128x6xf32>, vector<14x6xf32> -> vector<14x6xf32>
    %cst_35 = arith.constant 9.99999997E-7 : f32
    %56 = vector.broadcast %cst_35 : f32 to vector<14x6xf32>
    %57 = arith.addf %55, %56 : vector<14x6xf32>
    %58 = math.sqrt %57 : vector<14x6xf32>
    %c0_36 = arith.constant 0 : index
    %59 = memref.load %arg0[%c0_36] : memref<1xf32, #tpu.memory_space<smem>>
    %c0_37 = arith.constant 0 : index
    %60 = memref.load %arg1[%c0_37] : memref<1xf32, #tpu.memory_space<smem>>
    %cst_38 = arith.constant 0.000000e+00 : f32
    %61 = arith.subf %cst_38, %59 : f32
    %62 = vector.broadcast %61 : f32 to vector<14x6xf32>
    %63 = arith.mulf %62, %58 : vector<14x6xf32>
    %64 = vector.broadcast %60 : f32 to vector<14x6xf32>
    %65 = arith.addf %63, %64 : vector<14x6xf32>
    %cst_39 = arith.constant -2.000000e+00 : f32
    %66 = vector.broadcast %cst_39 : f32 to vector<14x6xf32>
    %67 = arith.mulf %66, %65 : vector<14x6xf32>
    %68 = math.exp %67 : vector<14x6xf32>
    %cst_40 = arith.constant 1.000000e+00 : f32
    %69 = vector.broadcast %cst_40 : f32 to vector<14x6xf32>
    %70 = arith.addf %69, %68 : vector<14x6xf32>
    %cst_41 = arith.constant 1.000000e+00 : f32
    %71 = vector.broadcast %cst_41 : f32 to vector<14x6xf32>
    %72 = arith.divf %71, %70 : vector<14x6xf32>
    %73 = vector.extract_strided_slice %65 {offsets = [0, 0], sizes = [2, 6], strides = [1, 1]} : vector<14x6xf32> to vector<2x6xf32>
    %74 = vector.extract_strided_slice %65 {offsets = [2, 0], sizes = [2, 6], strides = [1, 1]} : vector<14x6xf32> to vector<2x6xf32>
    %75 = arith.addf %73, %74 : vector<2x6xf32>
    %76 = vector.extract_strided_slice %65 {offsets = [4, 0], sizes = [2, 6], strides = [1, 1]} : vector<14x6xf32> to vector<2x6xf32>
    %77 = arith.addf %75, %76 : vector<2x6xf32>
    %78 = vector.extract_strided_slice %65 {offsets = [6, 0], sizes = [2, 6], strides = [1, 1]} : vector<14x6xf32> to vector<2x6xf32>
    %79 = arith.addf %77, %78 : vector<2x6xf32>
    %80 = vector.extract_strided_slice %65 {offsets = [8, 0], sizes = [2, 6], strides = [1, 1]} : vector<14x6xf32> to vector<2x6xf32>
    %81 = arith.addf %79, %80 : vector<2x6xf32>
    %82 = vector.extract_strided_slice %65 {offsets = [10, 0], sizes = [2, 6], strides = [1, 1]} : vector<14x6xf32> to vector<2x6xf32>
    %83 = arith.addf %81, %82 : vector<2x6xf32>
    %84 = vector.extract_strided_slice %65 {offsets = [12, 0], sizes = [2, 6], strides = [1, 1]} : vector<14x6xf32> to vector<2x6xf32>
    %85 = arith.addf %83, %84 : vector<2x6xf32>
    %cst_42 = arith.constant 0.142857149 : f32
    %86 = vector.broadcast %cst_42 : f32 to vector<2x6xf32>
    %87 = arith.mulf %85, %86 : vector<2x6xf32>
    %88 = vector.extract_strided_slice %72 {offsets = [0, 0], sizes = [2, 6], strides = [1, 1]} : vector<14x6xf32> to vector<2x6xf32>
    %89 = vector.extract_strided_slice %72 {offsets = [2, 0], sizes = [2, 6], strides = [1, 1]} : vector<14x6xf32> to vector<2x6xf32>
    %90 = arith.addf %88, %89 : vector<2x6xf32>
    %91 = vector.extract_strided_slice %72 {offsets = [4, 0], sizes = [2, 6], strides = [1, 1]} : vector<14x6xf32> to vector<2x6xf32>
    %92 = arith.addf %90, %91 : vector<2x6xf32>
    %93 = vector.extract_strided_slice %72 {offsets = [6, 0], sizes = [2, 6], strides = [1, 1]} : vector<14x6xf32> to vector<2x6xf32>
    %94 = arith.addf %92, %93 : vector<2x6xf32>
    %95 = vector.extract_strided_slice %72 {offsets = [8, 0], sizes = [2, 6], strides = [1, 1]} : vector<14x6xf32> to vector<2x6xf32>
    %96 = arith.addf %94, %95 : vector<2x6xf32>
    %97 = vector.extract_strided_slice %72 {offsets = [10, 0], sizes = [2, 6], strides = [1, 1]} : vector<14x6xf32> to vector<2x6xf32>
    %98 = arith.addf %96, %97 : vector<2x6xf32>
    %99 = vector.extract_strided_slice %72 {offsets = [12, 0], sizes = [2, 6], strides = [1, 1]} : vector<14x6xf32> to vector<2x6xf32>
    %100 = arith.addf %98, %99 : vector<2x6xf32>
    %cst_43 = arith.constant 0.142857149 : f32
    %101 = vector.broadcast %cst_43 : f32 to vector<2x6xf32>
    %102 = arith.mulf %100, %101 : vector<2x6xf32>
    %cst_44 = arith.constant dense<0.000000e+00> : vector<2x6xf32>
    %103 = tpu.matmul %32, %33, %cst_44 {dimension_numbers = #tpu.dot_dimension_numbers<[1], [0], [0], [1], [0, 0, 1, 1], [], []>} : vector<2x128xf32>, vector<128x6xf32>, vector<2x6xf32> -> vector<2x6xf32>
    %cst_45 = arith.constant 6.250000e-02 : f32
    %104 = vector.broadcast %cst_45 : f32 to vector<2x6xf32>
    %105 = arith.mulf %103, %104 : vector<2x6xf32>
    %106 = math.exp %105 : vector<2x6xf32>
    %cst_46 = arith.constant 0.000000e+00 : f32
    %107 = vector.broadcast %cst_46 : f32 to vector<2x110xf32>
    %108 = tpu.concatenate %87, %102, %106, %107 in 1 : vector<2x6xf32>, vector<2x6xf32>, vector<2x6xf32>, vector<2x110xf32> -> vector<2x128xf32>
    %c0_47 = arith.constant 0 : index
    %c0_48 = arith.constant 0 : index
    %109 = vector.load %arg12[%c0_47, %c0_48] : memref<2x128xf32, #tpu.memory_space<vmem>>, vector<2x128xf32>
    tpu.vector_store %arg12[%c0_47, %c0_48], %108 {strides = array<i32>} : memref<2x128xf32, #tpu.memory_space<vmem>>, vector<2x128xf32>,
    return
  }
}

</mosaic_0001>

<llo_original>
// kernel: reverse
$region0: #{reverse}
  #allocation0 [shape = 's32[1]{0}', space=sflag, size = 0x4, scoped, tag = 'scoped memory for reverse']
  %s0 = inlined_call_operand.vmem [shape: f32[3,3,32,32], index: 0, kind: input, shape index: {}]
  %s1 = inlined_call_operand.vmem [shape: bf16[3,3,32,32], index: 1, kind: output, shape index: {}]
  %s2 = scalar_lea.vmem %s0, 256
  %v3 = vld [vmem:[%s2] sm:$0xff]
  %v4 = vpack.c.bf16 0.0, %v3
  %5 = vst [vmem:[%s1] sm:$0xf] %v4
  %s6 = scalar_lea.vmem %s0, 160
  %v7 = vld [vmem:[%s6] sm:$0xff]
  %s8 = scalar_lea.vmem %s1, 48
  %v9 = vpack.c.bf16 0.0, %v7
  %10 = vst [vmem:[%s8] sm:$0xf] %v9
  %s11 = scalar_lea.vmem %s0, 64
  %v12 = vld [vmem:[%s11] sm:$0xff]
  %s13 = scalar_lea.vmem %s1, 96
  %v14 = vpack.c.bf16 0.0, %v12
  %15 = vst [vmem:[%s13] sm:$0xf] %v14
  %s16 = scalar_lea.vmem %s0, 224
  %v17 = vld [vmem:[%s16] sm:$0xff]
  %s18 = scalar_lea.vmem %s1, 16
  %v19 = vpack.c.bf16 0.0, %v17
  %20 = vst [vmem:[%s18] sm:$0xf] %v19
  %s21 = scalar_lea.vmem %s0, 128
  %v22 = vld [vmem:[%s21] sm:$0xff]
  %s23 = scalar_lea.vmem %s1, 64
  %v24 = vpack.c.bf16 0.0, %v22
  %25 = vst [vmem:[%s23] sm:$0xf] %v24
  %s26 = scalar_lea.vmem %s0, 32
  %v27 = vld [vmem:[%s26] sm:$0xff]
  %s28 = scalar_lea.vmem %s1, 112
  %v29 = vpack.c.bf16 0.0, %v27
  %30 = vst [vmem:[%s28] sm:$0xf] %v29
  %s31 = scalar_lea.vmem %s0, 192
  %v32 = vld [vmem:[%s31] sm:$0xff]
  %s33 = scalar_lea.vmem %s1, 32
  %v34 = vpack.c.bf16 0.0, %v32
  %35 = vst [vmem:[%s33] sm:$0xf] %v34
  %s36 = scalar_lea.vmem %s0, 96
  %v37 = vld [vmem:[%s36] sm:$0xff]
  %s38 = scalar_lea.vmem %s1, 80
  %v39 = vpack.c.bf16 0.0, %v37
  %40 = vst [vmem:[%s38] sm:$0xf] %v39
  %v41 = vld [vmem:[%s0] sm:$0xff]
  %s42 = scalar_lea.vmem %s1, 128
  %v43 = vpack.c.bf16 0.0, %v41
  %44 = vst [vmem:[%s42] sm:$0xf] %v43
  %s45 = scalar_lea.vmem %s0, 264
  %v46 = vld [vmem:[%s45] sm:$0xff]
  %s47 = scalar_lea.vmem %s1, 4
  %v48 = vpack.c.bf16 0.0, %v46
  %49 = vst [vmem:[%s47] sm:$0xf] %v48
  %s50 = scalar_lea.vmem %s0, 168
  %v51 = vld [vmem:[%s50] sm:$0xff]
  %s52 = scalar_lea.vmem %s1, 52
  %v53 = vpack.c.bf16 0.0, %v51
  %54 = vst [vmem:[%s52] sm:$0xf] %v53
  %s55 = scalar_lea.vmem %s0, 72
  %v56 = vld [vmem:[%s55] sm:$0xff]
  %s57 = scalar_lea.vmem %s1, 100
  %v58 = vpack.c.bf16 0.0, %v56
  %59 = vst [vmem:[%s57] sm:$0xf] %v58
  %s60 = scalar_lea.vmem %s0, 232
  %v61 = vld [vmem:[%s60] sm:$0xff]
  %s62 = scalar_lea.vmem %s1, 20
  %v63 = vpack.c.bf16 0.0, %v61
  %64 = vst [vmem:[%s62] sm:$0xf] %v63
  %s65 = scalar_lea.vmem %s0, 136
  %v66 = vld [vmem:[%s65] sm:$0xff]
  %s67 = scalar_lea.vmem %s1, 68
  %v68 = vpack.c.bf16 0.0, %v66
  %69 = vst [vmem:[%s67] sm:$0xf] %v68
  %s70 = scalar_lea.vmem %s0, 40
  %v71 = vld [vmem:[%s70] sm:$0xff]
  %s72 = scalar_lea.vmem %s1, 116
  %v73 = vpack.c.bf16 0.0, %v71
  %74 = vst [vmem:[%s72] sm:$0xf] %v73
  %s75 = scalar_lea.vmem %s0, 200
  %v76 = vld [vmem:[%s75] sm:$0xff]
  %s77 = scalar_lea.vmem %s1, 36
  %v78 = vpack.c.bf16 0.0, %v76
  %79 = vst [vmem:[%s77] sm:$0xf] %v78
  %s80 = scalar_lea.vmem %s0, 104
  %v81 = vld [vmem:[%s80] sm:$0xff]
  %s82 = scalar_lea.vmem %s1, 84
  %v83 = vpack.c.bf16 0.0, %v81
  %84 = vst [vmem:[%s82] sm:$0xf] %v83
  %s85 = scalar_lea.vmem %s0, 8
  %v86 = vld [vmem:[%s85] sm:$0xff]
  %s87 = scalar_lea.vmem %s1, 132
  %v88 = vpack.c.bf16 0.0, %v86
  %89 = vst [vmem:[%s87] sm:$0xf] %v88
  %s90 = scalar_lea.vmem %s0, 272
  %v91 = vld [vmem:[%s90] sm:$0xff]
  %s92 = scalar_lea.vmem %s1, 8
  %v93 = vpack.c.bf16 0.0, %v91
  %94 = vst [vmem:[%s92] sm:$0xf] %v93
  %s95 = scalar_lea.vmem %s0, 176
  %v96 = vld [vmem:[%s95] sm:$0xff]
  %s97 = scalar_lea.vmem %s1, 56
  %v98 = vpack.c.bf16 0.0, %v96
  %99 = vst [vmem:[%s97] sm:$0xf] %v98
  %s100 = scalar_lea.vmem %s0, 80
  %v101 = vld [vmem:[%s100] sm:$0xff]
  %s102 = scalar_lea.vmem %s1, 104
  %v103 = vpack.c.bf16 0.0, %v101
  %104 = vst [vmem:[%s102] sm:$0xf] %v103
  %s105 = scalar_lea.vmem %s0, 240
  %v106 = vld [vmem:[%s105] sm:$0xff]
  %s107 = scalar_lea.vmem %s1, 24
  %v108 = vpack.c.bf16 0.0, %v106
  %109 = vst [vmem:[%s107] sm:$0xf] %v108
  %s110 = scalar_lea.vmem %s0, 144
  %v111 = vld [vmem:[%s110] sm:$0xff]
  %s112 = scalar_lea.vmem %s1, 72
  %v113 = vpack.c.bf16 0.0, %v111
  %114 = vst [vmem:[%s112] sm:$0xf] %v113
  %s115 = scalar_lea.vmem %s0, 48
  %v116 = vld [vmem:[%s115] sm:$0xff]
  %s117 = scalar_lea.vmem %s1, 120
  %v118 = vpack.c.bf16 0.0, %v116
  %119 = vst [vmem:[%s117] sm:$0xf] %v118
  %s120 = scalar_lea.vmem %s0, 208
  %v121 = vld [vmem:[%s120] sm:$0xff]
  %s122 = scalar_lea.vmem %s1, 40
  %v123 = vpack.c.bf16 0.0, %v121
  %124 = vst [vmem:[%s122] sm:$0xf] %v123
  %s125 = scalar_lea.vmem %s0, 112
  %v126 = vld [vmem:[%s125] sm:$0xff]
  %s127 = scalar_lea.vmem %s1, 88
  %v128 = vpack.c.bf16 0.0, %v126
  %129 = vst [vmem:[%s127] sm:$0xf] %v128
  %s130 = scalar_lea.vmem %s0, 16
  %v131 = vld [vmem:[%s130] sm:$0xff]
  %s132 = scalar_lea.vmem %s1, 136
  %v133 = vpack.c.bf16 0.0, %v131
  %134 = vst [vmem:[%s132] sm:$0xf] %v133
  %s135 = scalar_lea.vmem %s0, 280
  %v136 = vld [vmem:[%s135] sm:$0xff]
  %s137 = scalar_lea.vmem %s1, 12
  %v138 = vpack.c.bf16 0.0, %v136
  %139 = vst [vmem:[%s137] sm:$0xf] %v138
  %s140 = scalar_lea.vmem %s0, 184
  %v141 = vld [vmem:[%s140] sm:$0xff]
  %s142 = scalar_lea.vmem %s1, 60
  %v143 = vpack.c.bf16 0.0, %v141
  %144 = vst [vmem:[%s142] sm:$0xf] %v143
  %s145 = scalar_lea.vmem %s0, 88
  %v146 = vld [vmem:[%s145] sm:$0xff]
  %s147 = scalar_lea.vmem %s1, 108
  %v148 = vpack.c.bf16 0.0, %v146
  %149 = vst [vmem:[%s147] sm:$0xf] %v148
  %s150 = scalar_lea.vmem %s0, 248
  %v151 = vld [vmem:[%s150] sm:$0xff]
  %s152 = scalar_lea.vmem %s1, 28
  %v153 = vpack.c.bf16 0.0, %v151
  %154 = vst [vmem:[%s152] sm:$0xf] %v153
  %s155 = scalar_lea.vmem %s0, 152
  %v156 = vld [vmem:[%s155] sm:$0xff]
  %s157 = scalar_lea.vmem %s1, 76
  %v158 = vpack.c.bf16 0.0, %v156
  %159 = vst [vmem:[%s157] sm:$0xf] %v158
  %s160 = scalar_lea.vmem %s0, 56
  %v161 = vld [vmem:[%s160] sm:$0xff]
  %s162 = scalar_lea.vmem %s1, 124
  %v163 = vpack.c.bf16 0.0, %v161
  %164 = vst [vmem:[%s162] sm:$0xf] %v163
  %s165 = scalar_lea.vmem %s0, 216
  %v166 = vld [vmem:[%s165] sm:$0xff]
  %s167 = scalar_lea.vmem %s1, 44
  %v168 = vpack.c.bf16 0.0, %v166
  %169 = vst [vmem:[%s167] sm:$0xf] %v168
  %s170 = scalar_lea.vmem %s0, 120
  %v171 = vld [vmem:[%s170] sm:$0xff]
  %s172 = scalar_lea.vmem %s1, 92
  %v173 = vpack.c.bf16 0.0, %v171
  %174 = vst [vmem:[%s172] sm:$0xf] %v173
  %s175 = scalar_lea.vmem %s0, 24
  %v176 = vld [vmem:[%s175] sm:$0xff]
  %s177 = scalar_lea.vmem %s1, 140
  %v178 = vpack.c.bf16 0.0, %v176
  %179 = vst [vmem:[%s177] sm:$0xf] %v178

// kernel: reverse.4
$region0: #{reverse.4}
  #allocation0 [shape = 's32[1]{0}', space=sflag, size = 0x4, scoped, tag = 'scoped memory for reverse.4']
  %s0 = inlined_call_operand.vmem [shape: f32[3,3,64,64], index: 0, kind: input, shape index: {}]
  %s1 = inlined_call_operand.vmem [shape: bf16[3,3,64,64], index: 1, kind: output, shape index: {}]
  %s2 = scalar_lea.vmem %s0, 512
  %v3 = vld [vmem:[%s2] sm:$0xff]
  %v4 = vpack.c.bf16 0.0, %v3
  %5 = vst [vmem:[%s1] sm:$0xf] %v4
  %s6 = scalar_lea.vmem %s0, 320
  %v7 = vld [vmem:[%s6] sm:$0xff]
  %s8 = scalar_lea.vmem %s1, 96
  %v9 = vpack.c.bf16 0.0, %v7
  %10 = vst [vmem:[%s8] sm:$0xf] %v9
  %s11 = scalar_lea.vmem %s0, 128
  %v12 = vld [vmem:[%s11] sm:$0xff]
  %s13 = scalar_lea.vmem %s1, 192
  %v14 = vpack.c.bf16 0.0, %v12
  %15 = vst [vmem:[%s13] sm:$0xf] %v14
  %s16 = scalar_lea.vmem %s0, 448
  %v17 = vld [vmem:[%s16] sm:$0xff]
  %s18 = scalar_lea.vmem %s1, 32
  %v19 = vpack.c.bf16 0.0, %v17
  %20 = vst [vmem:[%s18] sm:$0xf] %v19
  %s21 = scalar_lea.vmem %s0, 256
  %v22 = vld [vmem:[%s21] sm:$0xff]
  %s23 = scalar_lea.vmem %s1, 128
  %v24 = vpack.c.bf16 0.0, %v22
  %25 = vst [vmem:[%s23] sm:$0xf] %v24
  %s26 = scalar_lea.vmem %s0, 64
  %v27 = vld [vmem:[%s26] sm:$0xff]
  %s28 = scalar_lea.vmem %s1, 224
  %v29 = vpack.c.bf16 0.0, %v27
  %30 = vst [vmem:[%s28] sm:$0xf] %v29
  %s31 = scalar_lea.vmem %s0, 384
  %v32 = vld [vmem:[%s31] sm:$0xff]
  %s33 = scalar_lea.vmem %s1, 64
  %v34 = vpack.c.bf16 0.0, %v32
  %35 = vst [vmem:[%s33] sm:$0xf] %v34
  %s36 = scalar_lea.vmem %s0, 192
  %v37 = vld [vmem:[%s36] sm:$0xff]
  %s38 = scalar_lea.vmem %s1, 160
  %v39 = vpack.c.bf16 0.0, %v37
  %40 = vst [vmem:[%s38] sm:$0xf] %v39
  %v41 = vld [vmem:[%s0] sm:$0xff]
  %s42 = scalar_lea.vmem %s1, 256
  %v43 = vpack.c.bf16 0.0, %v41
  %44 = vst [vmem:[%s42] sm:$0xf] %v43
  %s45 = scalar_lea.vmem %s0, 520
  %v46 = vld [vmem:[%s45] sm:$0xff]
  %s47 = scalar_lea.vmem %s1, 4
  %v48 = vpack.c.bf16 0.0, %v46
  %49 = vst [vmem:[%s47] sm:$0xf] %v48
  %s50 = scalar_lea.vmem %s0, 328
  %v51 = vld [vmem:[%s50] sm:$0xff]
  %s52 = scalar_lea.vmem %s1, 100
  %v53 = vpack.c.bf16 0.0, %v51
  %54 = vst [vmem:[%s52] sm:$0xf] %v53
  %s55 = scalar_lea.vmem %s0, 136
  %v56 = vld [vmem:[%s55] sm:$0xff]
  %s57 = scalar_lea.vmem %s1, 196
  %v58 = vpack.c.bf16 0.0, %v56
  %59 = vst [vmem:[%s57] sm:$0xf] %v58
  %s60 = scalar_lea.vmem %s0, 456
  %v61 = vld [vmem:[%s60] sm:$0xff]
  %s62 = scalar_lea.vmem %s1, 36
  %v63 = vpack.c.bf16 0.0, %v61
  %64 = vst [vmem:[%s62] sm:$0xf] %v63
  %s65 = scalar_lea.vmem %s0, 264
  %v66 = vld [vmem:[%s65] sm:$0xff]
  %s67 = scalar_lea.vmem %s1, 132
  %v68 = vpack.c.bf16 0.0, %v66
  %69 = vst [vmem:[%s67] sm:$0xf] %v68
  %s70 = scalar_lea.vmem %s0, 72
  %v71 = vld [vmem:[%s70] sm:$0xff]
  %s72 = scalar_lea.vmem %s1, 228
  %v73 = vpack.c.bf16 0.0, %v71
  %74 = vst [vmem:[%s72] sm:$0xf] %v73
  %s75 = scalar_lea.vmem %s0, 392
  %v76 = vld [vmem:[%s75] sm:$0xff]
  %s77 = scalar_lea.vmem %s1, 68
  %v78 = vpack.c.bf16 0.0, %v76
  %79 = vst [vmem:[%s77] sm:$0xf] %v78
  %s80 = scalar_lea.vmem %s0, 200
  %v81 = vld [vmem:[%s80] sm:$0xff]
  %s82 = scalar_lea.vmem %s1, 164
  %v83 = vpack.c.bf16 0.0, %v81
  %84 = vst [vmem:[%s82] sm:$0xf] %v83
  %s85 = scalar_lea.vmem %s0, 8
  %v86 = vld [vmem:[%s85] sm:$0xff]
  %s87 = scalar_lea.vmem %s1, 260
  %v88 = vpack.c.bf16 0.0, %v86
  %89 = vst [vmem:[%s87] sm:$0xf] %v88
  %s90 = scalar_lea.vmem %s0, 528
  %v91 = vld [vmem:[%s90] sm:$0xff]
  %s92 = scalar_lea.vmem %s1, 8
  %v93 = vpack.c.bf16 0.0, %v91
  %94 = vst [vmem:[%s92] sm:$0xf] %v93
  %s95 = scalar_lea.vmem %s0, 336
  %v96 = vld [vmem:[%s95] sm:$0xff]
  %s97 = scalar_lea.vmem %s1, 104
  %v98 = vpack.c.bf16 0.0, %v96
  %99 = vst [vmem:[%s97] sm:$0xf] %v98
  %s100 = scalar_lea.vmem %s0, 144
  %v101 = vld [vmem:[%s100] sm:$0xff]
  %s102 = scalar_lea.vmem %s1, 200
  %v103 = vpack.c.bf16 0.0, %v101
  %104 = vst [vmem:[%s102] sm:$0xf] %v103
  %s105 = scalar_lea.vmem %s0, 464
  %v106 = vld [vmem:[%s105] sm:$0xff]
  %s107 = scalar_lea.vmem %s1, 40
  %v108 = vpack.c.bf16 0.0, %v106
  %109 = vst [vmem:[%s107] sm:$0xf] %v108
  %s110 = scalar_lea.vmem %s0, 272
  %v111 = vld [vmem:[%s110] sm:$0xff]
  %s112 = scalar_lea.vmem %s1, 136
  %v113 = vpack.c.bf16 0.0, %v111
  %114 = vst [vmem:[%s112] sm:$0xf] %v113
  %s115 = scalar_lea.vmem %s0, 80
  %v116 = vld [vmem:[%s115] sm:$0xff]
  %s117 = scalar_lea.vmem %s1, 232
  %v118 = vpack.c.bf16 0.0, %v116
  %119 = vst [vmem:[%s117] sm:$0xf] %v118
  %s120 = scalar_lea.vmem %s0, 400
  %v121 = vld [vmem:[%s120] sm:$0xff]
  %s122 = scalar_lea.vmem %s1, 72
  %v123 = vpack.c.bf16 0.0, %v121
  %124 = vst [vmem:[%s122] sm:$0xf] %v123
  %s125 = scalar_lea.vmem %s0, 208
  %v126 = vld [vmem:[%s125] sm:$0xff]
  %s127 = scalar_lea.vmem %s1, 168
  %v128 = vpack.c.bf16 0.0, %v126
  %129 = vst [vmem:[%s127] sm:$0xf] %v128
  %s130 = scalar_lea.vmem %s0, 16
  %v131 = vld [vmem:[%s130] sm:$0xff]
  %s132 = scalar_lea.vmem %s1, 264
  %v133 = vpack.c.bf16 0.0, %v131
  %134 = vst [vmem:[%s132] sm:$0xf] %v133
  %s135 = scalar_lea.vmem %s0, 536
  %v136 = vld [vmem:[%s135] sm:$0xff]
  %s137 = scalar_lea.vmem %s1, 12
  %v138 = vpack.c.bf16 0.0, %v136
  %139 = vst [vmem:[%s137] sm:$0xf] %v138
  %s140 = scalar_lea.vmem %s0, 344
  %v141 = vld [vmem:[%s140] sm:$0xff]
  %s142 = scalar_lea.vmem %s1, 108
  %v143 = vpack.c.bf16 0.0, %v141
  %144 = vst [vmem:[%s142] sm:$0xf] %v143
  %s145 = scalar_lea.vmem %s0, 152
  %v146 = vld [vmem:[%s145] sm:$0xff]
  %s147 = scalar_lea.vmem %s1, 204
  %v148 = vpack.c.bf16 0.0, %v146
  %149 = vst [vmem:[%s147] sm:$0xf] %v148
  %s150 = scalar_lea.vmem %s0, 472
  %v151 = vld [vmem:[%s150] sm:$0xff]
  %s152 = scalar_lea.vmem %s1, 44
  %v153 = vpack.c.bf16 0.0, %v151
  %154 = vst [vmem:[%s152] sm:$0xf] %v153
  %s155 = scalar_lea.vmem %s0, 280
  %v156 = vld [vmem:[%s155] sm:$0xff]
  %s157 = scalar_lea.vmem %s1, 140
  %v158 = vpack.c.bf16 0.0, %v156
  %159 = vst [vmem:[%s157] sm:$0xf] %v158
  %s160 = scalar_lea.vmem %s0, 88
  %v161 = vld [vmem:[%s160] sm:$0xff]
  %s162 = scalar_lea.vmem %s1, 236
  %v163 = vpack.c.bf16 0.0, %v161
  %164 = vst [vmem:[%s162] sm:$0xf] %v163
  %s165 = scalar_lea.vmem %s0, 408
  %v166 = vld [vmem:[%s165] sm:$0xff]
  %s167 = scalar_lea.vmem %s1, 76
  %v168 = vpack.c.bf16 0.0, %v166
  %169 = vst [vmem:[%s167] sm:$0xf] %v168
  %s170 = scalar_lea.vmem %s0, 216
  %v171 = vld [vmem:[%s170] sm:$0xff]
  %s172 = scalar_lea.vmem %s1, 172
  %v173 = vpack.c.bf16 0.0, %v171
  %174 = vst [vmem:[%s172] sm:$0xf] %v173
  %s175 = scalar_lea.vmem %s0, 24
  %v176 = vld [vmem:[%s175] sm:$0xff]
  %s177 = scalar_lea.vmem %s1, 268
  %v178 = vpack.c.bf16 0.0, %v176
  %179 = vst [vmem:[%s177] sm:$0xf] %v178
  %s180 = scalar_lea.vmem %s0, 544
  %v181 = vld [vmem:[%s180] sm:$0xff]
  %s182 = scalar_lea.vmem %s1, 16
  %v183 = vpack.c.bf16 0.0, %v181
  %184 = vst [vmem:[%s182] sm:$0xf] %v183
  %s185 = scalar_lea.vmem %s0, 352
  %v186 = vld [vmem:[%s185] sm:$0xff]
  %s187 = scalar_lea.vmem %s1, 112
  %v188 = vpack.c.bf16 0.0, %v186
  %189 = vst [vmem:[%s187] sm:$0xf] %v188
  %s190 = scalar_lea.vmem %s0, 160
  %v191 = vld [vmem:[%s190] sm:$0xff]
  %s192 = scalar_lea.vmem %s1, 208
  %v193 = vpack.c.bf16 0.0, %v191
  %194 = vst [vmem:[%s192] sm:$0xf] %v193
  %s195 = scalar_lea.vmem %s0, 480
  %v196 = vld [vmem:[%s195] sm:$0xff]
  %s197 = scalar_lea.vmem %s1, 48
  %v198 = vpack.c.bf16 0.0, %v196
  %199 = vst [vmem:[%s197] sm:$0xf] %v198
  %s200 = scalar_lea.vmem %s0, 288
  %v201 = vld [vmem:[%s200] sm:$0xff]
  %s202 = scalar_lea.vmem %s1, 144
  %v203 = vpack.c.bf16 0.0, %v201
  %204 = vst [vmem:[%s202] sm:$0xf] %v203
  %s205 = scalar_lea.vmem %s0, 96
  %v206 = vld [vmem:[%s205] sm:$0xff]
  %s207 = scalar_lea.vmem %s1, 240
  %v208 = vpack.c.bf16 0.0, %v206
  %209 = vst [vmem:[%s207] sm:$0xf] %v208
  %s210 = scalar_lea.vmem %s0, 416
  %v211 = vld [vmem:[%s210] sm:$0xff]
  %s212 = scalar_lea.vmem %s1, 80
  %v213 = vpack.c.bf16 0.0, %v211
  %214 = vst [vmem:[%s212] sm:$0xf] %v213
  %s215 = scalar_lea.vmem %s0, 224
  %v216 = vld [vmem:[%s215] sm:$0xff]
  %s217 = scalar_lea.vmem %s1, 176
  %v218 = vpack.c.bf16 0.0, %v216
  %219 = vst [vmem:[%s217] sm:$0xf] %v218
  %s220 = scalar_lea.vmem %s0, 32
  %v221 = vld [vmem:[%s220] sm:$0xff]
  %s222 = scalar_lea.vmem %s1, 272
  %v223 = vpack.c.bf16 0.0, %v221
  %224 = vst [vmem:[%s222] sm:$0xf] %v223
  %s225 = scalar_lea.vmem %s0, 552
  %v226 = vld [vmem:[%s225] sm:$0xff]
  %s227 = scalar_lea.vmem %s1, 20
  %v228 = vpack.c.bf16 0.0, %v226
  %229 = vst [vmem:[%s227] sm:$0xf] %v228
  %s230 = scalar_lea.vmem %s0, 360
  %v231 = vld [vmem:[%s230] sm:$0xff]
  %s232 = scalar_lea.vmem %s1, 116
  %v233 = vpack.c.bf16 0.0, %v231
  %234 = vst [vmem:[%s232] sm:$0xf] %v233
  %s235 = scalar_lea.vmem %s0, 168
  %v236 = vld [vmem:[%s235] sm:$0xff]
  %s237 = scalar_lea.vmem %s1, 212
  %v238 = vpack.c.bf16 0.0, %v236
  %239 = vst [vmem:[%s237] sm:$0xf] %v238
  %s240 = scalar_lea.vmem %s0, 488
  %v241 = vld [vmem:[%s240] sm:$0xff]
  %s242 = scalar_lea.vmem %s1, 52
  %v243 = vpack.c.bf16 0.0, %v241
  %244 = vst [vmem:[%s242] sm:$0xf] %v243
  %s245 = scalar_lea.vmem %s0, 296
  %v246 = vld [vmem:[%s245] sm:$0xff]
  %s247 = scalar_lea.vmem %s1, 148
  %v248 = vpack.c.bf16 0.0, %v246
  %249 = vst [vmem:[%s247] sm:$0xf] %v248
  %s250 = scalar_lea.vmem %s0, 104
  %v251 = vld [vmem:[%s250] sm:$0xff]
  %s252 = scalar_lea.vmem %s1, 244
  %v253 = vpack.c.bf16 0.0, %v251
  %254 = vst [vmem:[%s252] sm:$0xf] %v253
  %s255 = scalar_lea.vmem %s0, 424
  %v256 = vld [vmem:[%s255] sm:$0xff]
  %s257 = scalar_lea.vmem %s1, 84
  %v258 = vpack.c.bf16 0.0, %v256
  %259 = vst [vmem:[%s257] sm:$0xf] %v258
  %s260 = scalar_lea.vmem %s0, 232
  %v261 = vld [vmem:[%s260] sm:$0xff]
  %s262 = scalar_lea.vmem %s1, 180
  %v263 = vpack.c.bf16 0.0, %v261
  %264 = vst [vmem:[%s262] sm:$0xf] %v263
  %s265 = scalar_lea.vmem %s0, 40
  %v266 = vld [vmem:[%s265] sm:$0xff]
  %s267 = scalar_lea.vmem %s1, 276
  %v268 = vpack.c.bf16 0.0, %v266
  %269 = vst [vmem:[%s267] sm:$0xf] %v268
  %s270 = scalar_lea.vmem %s0, 560
  %v271 = vld [vmem:[%s270] sm:$0xff]
  %s272 = scalar_lea.vmem %s1, 24
  %v273 = vpack.c.bf16 0.0, %v271
  %274 = vst [vmem:[%s272] sm:$0xf] %v273
  %s275 = scalar_lea.vmem %s0, 368
  %v276 = vld [vmem:[%s275] sm:$0xff]
  %s277 = scalar_lea.vmem %s1, 120
  %v278 = vpack.c.bf16 0.0, %v276
  %279 = vst [vmem:[%s277] sm:$0xf] %v278
  %s280 = scalar_lea.vmem %s0, 176
  %v281 = vld [vmem:[%s280] sm:$0xff]
  %s282 = scalar_lea.vmem %s1, 216
  %v283 = vpack.c.bf16 0.0, %v281
  %284 = vst [vmem:[%s282] sm:$0xf] %v283
  %s285 = scalar_lea.vmem %s0, 496
  %v286 = vld [vmem:[%s285] sm:$0xff]
  %s287 = scalar_lea.vmem %s1, 56
  %v288 = vpack.c.bf16 0.0, %v286
  %289 = vst [vmem:[%s287] sm:$0xf] %v288
  %s290 = scalar_lea.vmem %s0, 304
  %v291 = vld [vmem:[%s290] sm:$0xff]
  %s292 = scalar_lea.vmem %s1, 152
  %v293 = vpack.c.bf16 0.0, %v291
  %294 = vst [vmem:[%s292] sm:$0xf] %v293
  %s295 = scalar_lea.vmem %s0, 112
  %v296 = vld [vmem:[%s295] sm:$0xff]
  %s297 = scalar_lea.vmem %s1, 248
  %v298 = vpack.c.bf16 0.0, %v296
  %299 = vst [vmem:[%s297] sm:$0xf] %v298
  %s300 = scalar_lea.vmem %s0, 432
  %v301 = vld [vmem:[%s300] sm:$0xff]
  %s302 = scalar_lea.vmem %s1, 88
  %v303 = vpack.c.bf16 0.0, %v301
  %304 = vst [vmem:[%s302] sm:$0xf] %v303
  %s305 = scalar_lea.vmem %s0, 240
  %v306 = vld [vmem:[%s305] sm:$0xff]
  %s307 = scalar_lea.vmem %s1, 184
  %v308 = vpack.c.bf16 0.0, %v306
  %309 = vst [vmem:[%s307] sm:$0xf] %v308
  %s310 = scalar_lea.vmem %s0, 48
  %v311 = vld [vmem:[%s310] sm:$0xff]
  %s312 = scalar_lea.vmem %s1, 280
  %v313 = vpack.c.bf16 0.0, %v311
  %314 = vst [vmem:[%s312] sm:$0xf] %v313
  %s315 = scalar_lea.vmem %s0, 568
  %v316 = vld [vmem:[%s315] sm:$0xff]
  %s317 = scalar_lea.vmem %s1, 28
  %v318 = vpack.c.bf16 0.0, %v316
  %319 = vst [vmem:[%s317] sm:$0xf] %v318
  %s320 = scalar_lea.vmem %s0, 376
  %v321 = vld [vmem:[%s320] sm:$0xff]
  %s322 = scalar_lea.vmem %s1, 124
  %v323 = vpack.c.bf16 0.0, %v321
  %324 = vst [vmem:[%s322] sm:$0xf] %v323
  %s325 = scalar_lea.vmem %s0, 184
  %v326 = vld [vmem:[%s325] sm:$0xff]
  %s327 = scalar_lea.vmem %s1, 220
  %v328 = vpack.c.bf16 0.0, %v326
  %329 = vst [vmem:[%s327] sm:$0xf] %v328
  %s330 = scalar_lea.vmem %s0, 504
  %v331 = vld [vmem:[%s330] sm:$0xff]
  %s332 = scalar_lea.vmem %s1, 60
  %v333 = vpack.c.bf16 0.0, %v331
  %334 = vst [vmem:[%s332] sm:$0xf] %v333
  %s335 = scalar_lea.vmem %s0, 312
  %v336 = vld [vmem:[%s335] sm:$0xff]
  %s337 = scalar_lea.vmem %s1, 156
  %v338 = vpack.c.bf16 0.0, %v336
  %339 = vst [vmem:[%s337] sm:$0xf] %v338
  %s340 = scalar_lea.vmem %s0, 120
  %v341 = vld [vmem:[%s340] sm:$0xff]
  %s342 = scalar_lea.vmem %s1, 252
  %v343 = vpack.c.bf16 0.0, %v341
  %344 = vst [vmem:[%s342] sm:$0xf] %v343
  %s345 = scalar_lea.vmem %s0, 440
  %v346 = vld [vmem:[%s345] sm:$0xff]
  %s347 = scalar_lea.vmem %s1, 92
  %v348 = vpack.c.bf16 0.0, %v346
  %349 = vst [vmem:[%s347] sm:$0xf] %v348
  %s350 = scalar_lea.vmem %s0, 248
  %v351 = vld [vmem:[%s350] sm:$0xff]
  %s352 = scalar_lea.vmem %s1, 188
  %v353 = vpack.c.bf16 0.0, %v351
  %354 = vst [vmem:[%s352] sm:$0xf] %v353
  %s355 = scalar_lea.vmem %s0, 56
  %v356 = vld [vmem:[%s355] sm:$0xff]
  %s357 = scalar_lea.vmem %s1, 284
  %v358 = vpack.c.bf16 0.0, %v356
  %359 = vst [vmem:[%s357] sm:$0xf] %v358

// kernel: reverse.3
$region0: #{reverse.3}
  #allocation0 [shape = 's32[1]{0}', space=sflag, size = 0x4, scoped, tag = 'scoped memory for reverse.3']
  %s0 = inlined_call_operand.vmem [shape: f32[3,3,32,64], index: 0, kind: input, shape index: {}]
  %s1 = inlined_call_operand.vmem [shape: bf16[3,3,32,64], index: 1, kind: output, shape index: {}]
  %s2 = scalar_lea.vmem %s0, 256
  %v3 = vld [vmem:[%s2] sm:$0xff]
  %v4 = vpack.c.bf16 0.0, %v3
  %5 = vst [vmem:[%s1] sm:$0xf] %v4
  %s6 = scalar_lea.vmem %s0, 160
  %v7 = vld [vmem:[%s6] sm:$0xff]
  %s8 = scalar_lea.vmem %s1, 48
  %v9 = vpack.c.bf16 0.0, %v7
  %10 = vst [vmem:[%s8] sm:$0xf] %v9
  %s11 = scalar_lea.vmem %s0, 64
  %v12 = vld [vmem:[%s11] sm:$0xff]
  %s13 = scalar_lea.vmem %s1, 96
  %v14 = vpack.c.bf16 0.0, %v12
  %15 = vst [vmem:[%s13] sm:$0xf] %v14
  %s16 = scalar_lea.vmem %s0, 224
  %v17 = vld [vmem:[%s16] sm:$0xff]
  %s18 = scalar_lea.vmem %s1, 16
  %v19 = vpack.c.bf16 0.0, %v17
  %20 = vst [vmem:[%s18] sm:$0xf] %v19
  %s21 = scalar_lea.vmem %s0, 128
  %v22 = vld [vmem:[%s21] sm:$0xff]
  %s23 = scalar_lea.vmem %s1, 64
  %v24 = vpack.c.bf16 0.0, %v22
  %25 = vst [vmem:[%s23] sm:$0xf] %v24
  %s26 = scalar_lea.vmem %s0, 32
  %v27 = vld [vmem:[%s26] sm:$0xff]
  %s28 = scalar_lea.vmem %s1, 112
  %v29 = vpack.c.bf16 0.0, %v27
  %30 = vst [vmem:[%s28] sm:$0xf] %v29
  %s31 = scalar_lea.vmem %s0, 192
  %v32 = vld [vmem:[%s31] sm:$0xff]
  %s33 = scalar_lea.vmem %s1, 32
  %v34 = vpack.c.bf16 0.0, %v32
  %35 = vst [vmem:[%s33] sm:$0xf] %v34
  %s36 = scalar_lea.vmem %s0, 96
  %v37 = vld [vmem:[%s36] sm:$0xff]
  %s38 = scalar_lea.vmem %s1, 80
  %v39 = vpack.c.bf16 0.0, %v37
  %40 = vst [vmem:[%s38] sm:$0xf] %v39
  %v41 = vld [vmem:[%s0] sm:$0xff]
  %s42 = scalar_lea.vmem %s1, 128
  %v43 = vpack.c.bf16 0.0, %v41
  %44 = vst [vmem:[%s42] sm:$0xf] %v43
  %s45 = scalar_lea.vmem %s0, 264
  %v46 = vld [vmem:[%s45] sm:$0xff]
  %s47 = scalar_lea.vmem %s1, 4
  %v48 = vpack.c.bf16 0.0, %v46
  %49 = vst [vmem:[%s47] sm:$0xf] %v48
  %s50 = scalar_lea.vmem %s0, 168
  %v51 = vld [vmem:[%s50] sm:$0xff]
  %s52 = scalar_lea.vmem %s1, 52
  %v53 = vpack.c.bf16 0.0, %v51
  %54 = vst [vmem:[%s52] sm:$0xf] %v53
  %s55 = scalar_lea.vmem %s0, 72
  %v56 = vld [vmem:[%s55] sm:$0xff]
  %s57 = scalar_lea.vmem %s1, 100
  %v58 = vpack.c.bf16 0.0, %v56
  %59 = vst [vmem:[%s57] sm:$0xf] %v58
  %s60 = scalar_lea.vmem %s0, 232
  %v61 = vld [vmem:[%s60] sm:$0xff]
  %s62 = scalar_lea.vmem %s1, 20
  %v63 = vpack.c.bf16 0.0, %v61
  %64 = vst [vmem:[%s62] sm:$0xf] %v63
  %s65 = scalar_lea.vmem %s0, 136
  %v66 = vld [vmem:[%s65] sm:$0xff]
  %s67 = scalar_lea.vmem %s1, 68
  %v68 = vpack.c.bf16 0.0, %v66
  %69 = vst [vmem:[%s67] sm:$0xf] %v68
  %s70 = scalar_lea.vmem %s0, 40
  %v71 = vld [vmem:[%s70] sm:$0xff]
  %s72 = scalar_lea.vmem %s1, 116
  %v73 = vpack.c.bf16 0.0, %v71
  %74 = vst [vmem:[%s72] sm:$0xf] %v73
  %s75 = scalar_lea.vmem %s0, 200
  %v76 = vld [vmem:[%s75] sm:$0xff]
  %s77 = scalar_lea.vmem %s1, 36
  %v78 = vpack.c.bf16 0.0, %v76
  %79 = vst [vmem:[%s77] sm:$0xf] %v78
  %s80 = scalar_lea.vmem %s0, 104
  %v81 = vld [vmem:[%s80] sm:$0xff]
  %s82 = scalar_lea.vmem %s1, 84
  %v83 = vpack.c.bf16 0.0, %v81
  %84 = vst [vmem:[%s82] sm:$0xf] %v83
  %s85 = scalar_lea.vmem %s0, 8
  %v86 = vld [vmem:[%s85] sm:$0xff]
  %s87 = scalar_lea.vmem %s1, 132
  %v88 = vpack.c.bf16 0.0, %v86
  %89 = vst [vmem:[%s87] sm:$0xf] %v88
  %s90 = scalar_lea.vmem %s0, 272
  %v91 = vld [vmem:[%s90] sm:$0xff]
  %s92 = scalar_lea.vmem %s1, 8
  %v93 = vpack.c.bf16 0.0, %v91
  %94 = vst [vmem:[%s92] sm:$0xf] %v93
  %s95 = scalar_lea.vmem %s0, 176
  %v96 = vld [vmem:[%s95] sm:$0xff]
  %s97 = scalar_lea.vmem %s1, 56
  %v98 = vpack.c.bf16 0.0, %v96
  %99 = vst [vmem:[%s97] sm:$0xf] %v98
  %s100 = scalar_lea.vmem %s0, 80
  %v101 = vld [vmem:[%s100] sm:$0xff]
  %s102 = scalar_lea.vmem %s1, 104
  %v103 = vpack.c.bf16 0.0, %v101
  %104 = vst [vmem:[%s102] sm:$0xf] %v103
  %s105 = scalar_lea.vmem %s0, 240
  %v106 = vld [vmem:[%s105] sm:$0xff]
  %s107 = scalar_lea.vmem %s1, 24
  %v108 = vpack.c.bf16 0.0, %v106
  %109 = vst [vmem:[%s107] sm:$0xf] %v108
  %s110 = scalar_lea.vmem %s0, 144
  %v111 = vld [vmem:[%s110] sm:$0xff]
  %s112 = scalar_lea.vmem %s1, 72
  %v113 = vpack.c.bf16 0.0, %v111
  %114 = vst [vmem:[%s112] sm:$0xf] %v113
  %s115 = scalar_lea.vmem %s0, 48
  %v116 = vld [vmem:[%s115] sm:$0xff]
  %s117 = scalar_lea.vmem %s1, 120
  %v118 = vpack.c.bf16 0.0, %v116
  %119 = vst [vmem:[%s117] sm:$0xf] %v118
  %s120 = scalar_lea.vmem %s0, 208
  %v121 = vld [vmem:[%s120] sm:$0xff]
  %s122 = scalar_lea.vmem %s1, 40
  %v123 = vpack.c.bf16 0.0, %v121
  %124 = vst [vmem:[%s122] sm:$0xf] %v123
  %s125 = scalar_lea.vmem %s0, 112
  %v126 = vld [vmem:[%s125] sm:$0xff]
  %s127 = scalar_lea.vmem %s1, 88
  %v128 = vpack.c.bf16 0.0, %v126
  %129 = vst [vmem:[%s127] sm:$0xf] %v128
  %s130 = scalar_lea.vmem %s0, 16
  %v131 = vld [vmem:[%s130] sm:$0xff]
  %s132 = scalar_lea.vmem %s1, 136
  %v133 = vpack.c.bf16 0.0, %v131
  %134 = vst [vmem:[%s132] sm:$0xf] %v133
  %s135 = scalar_lea.vmem %s0, 280
  %v136 = vld [vmem:[%s135] sm:$0xff]
  %s137 = scalar_lea.vmem %s1, 12
  %v138 = vpack.c.bf16 0.0, %v136
  %139 = vst [vmem:[%s137] sm:$0xf] %v138
  %s140 = scalar_lea.vmem %s0, 184
  %v141 = vld [vmem:[%s140] sm:$0xff]
  %s142 = scalar_lea.vmem %s1, 60
  %v143 = vpack.c.bf16 0.0, %v141
  %144 = vst [vmem:[%s142] sm:$0xf] %v143
  %s145 = scalar_lea.vmem %s0, 88
  %v146 = vld [vmem:[%s145] sm:$0xff]
  %s147 = scalar_lea.vmem %s1, 108
  %v148 = vpack.c.bf16 0.0, %v146
  %149 = vst [vmem:[%s147] sm:$0xf] %v148
  %s150 = scalar_lea.vmem %s0, 248
  %v151 = vld [vmem:[%s150] sm:$0xff]
  %s152 = scalar_lea.vmem %s1, 28
  %v153 = vpack.c.bf16 0.0, %v151
  %154 = vst [vmem:[%s152] sm:$0xf] %v153
  %s155 = scalar_lea.vmem %s0, 152
  %v156 = vld [vmem:[%s155] sm:$0xff]
  %s157 = scalar_lea.vmem %s1, 76
  %v158 = vpack.c.bf16 0.0, %v156
  %159 = vst [vmem:[%s157] sm:$0xf] %v158
  %s160 = scalar_lea.vmem %s0, 56
  %v161 = vld [vmem:[%s160] sm:$0xff]
  %s162 = scalar_lea.vmem %s1, 124
  %v163 = vpack.c.bf16 0.0, %v161
  %164 = vst [vmem:[%s162] sm:$0xf] %v163
  %s165 = scalar_lea.vmem %s0, 216
  %v166 = vld [vmem:[%s165] sm:$0xff]
  %s167 = scalar_lea.vmem %s1, 44
  %v168 = vpack.c.bf16 0.0, %v166
  %169 = vst [vmem:[%s167] sm:$0xf] %v168
  %s170 = scalar_lea.vmem %s0, 120
  %v171 = vld [vmem:[%s170] sm:$0xff]
  %s172 = scalar_lea.vmem %s1, 92
  %v173 = vpack.c.bf16 0.0, %v171
  %174 = vst [vmem:[%s172] sm:$0xf] %v173
  %s175 = scalar_lea.vmem %s0, 24
  %v176 = vld [vmem:[%s175] sm:$0xff]
  %s177 = scalar_lea.vmem %s1, 140
  %v178 = vpack.c.bf16 0.0, %v176
  %179 = vst [vmem:[%s177] sm:$0xf] %v178

// kernel: squeeze.5
$region0: #{squeeze.5}
  %s0 = inlined_call_operand.vmem [shape: f32[6,16], index: 0, kind: input, shape index: {}]
  %s1 = inlined_call_operand.vmem [shape: f32[1,96], index: 1, kind: output, shape index: {}]
  $region1: #{squeeze.5} parent=0
    #allocation0 [shape = 'u8[4096]{0}', space=vmem, size = 0x1000, scoped, tag = 'scoped mem for output reshape']
    %v2 = vld [vmem:[%s0] sm:$0x1]
    %vm3 = vcmask 130048
    %4 = vst.msk [vmem:[#allocation0] sm:$0x1] %vm3, %v2
    %s5 = scalar_lea.vmem %s0, 5
    %v6 = vld [vmem:[%s5] sm:$0x1]
    %7 = vrot.lane.b32.xlu0 %v6, 80
    %v8 = vpop.permute.xlu0 %7
    %vm9 = vcmask 786048
    %10 = vst.msk [vmem:[#allocation0] sm:$0x1] %vm9, %v8
    %s11 = scalar_lea.vmem %s0, 4
    %v12 = vld [vmem:[%s11] sm:$0x1]
    %13 = vrot.lane.b32.xlu0 %v12, 64
    %v14 = vpop.permute.xlu0 %13
    %vm15 = vcmask 654848
    %16 = vst.msk [vmem:[#allocation0] sm:$0x1] %vm15, %v14
    %s17 = scalar_lea.vmem %s0, 3
    %v18 = vld [vmem:[%s17] sm:$0x1]
    %19 = vrot.lane.b32.xlu0 %v18, 48
    %v20 = vpop.permute.xlu0 %19
    %vm21 = vcmask 523648
    %22 = vst.msk [vmem:[#allocation0] sm:$0x1] %vm21, %v20
    %s23 = scalar_lea.vmem %s0, 2
    %v24 = vld [vmem:[%s23] sm:$0x1]
    %25 = vrot.lane.b32.xlu0 %v24, 32
    %v26 = vpop.permute.xlu0 %25
    %vm27 = vcmask 392448
    %28 = vst.msk [vmem:[#allocation0] sm:$0x1] %vm27, %v26
    %s29 = scalar_lea.vmem %s0, 1
    %v30 = vld [vmem:[%s29] sm:$0x1]
    %31 = vrot.lane.b32.xlu0 %v30, 16
    %v32 = vpop.permute.xlu0 %31
    %vm33 = vcmask 261248
    %34 = vst.msk [vmem:[#allocation0] sm:$0x1] %vm33, %v32
    %s36 = sshllo.u32 0, 1
    %v38 = vld [vmem:[#allocation0] sm:%s36]
    %s39 = sshllo.u32 0, 1
    %40 = vst [vmem:[%s1] sm:%s39] %v38

// kernel: prob_concept_forward.1
$region0: #{prob_concept_forward.1}
  #allocation0 [shape = 'u32[]', space=smem, size = 0x4, offset = 0x4, fixed_abs, tag = 'smem constant byte address 0x4 - core index']
  #allocation1 [shape = 'u32[144,128]{1,0:T(1,128)}', space=vmem, size = 0x12000, scoped, tag = 'internal scratch']
  #allocation2 [shape = 'f32[1]{0:T(128)S(6)}', space=smem, size = 0x200, scoped, tag = 'scoped memory for prob_concept_forward.1']
  #allocation3 [shape = 'f32[1]{0:T(128)S(6)}', space=smem, size = 0x200, scoped, tag = 'scoped memory for prob_concept_forward.1']
  %s0 = inlined_call_operand.<no memory space> [shape: f32[1], index: 0, kind: input, shape index: {}]
  %s1 = inlined_call_operand.<no memory space> [shape: f32[1], index: 1, kind: input, shape index: {}]
  %s2 = inlined_call_operand.vmem [shape: f32[2,64], index: 2, kind: input, shape index: {}]
  %s3 = inlined_call_operand.vmem [shape: f32[64,256], index: 3, kind: input, shape index: {}]
  %s4 = inlined_call_operand.vmem [shape: f32[2,256,256], index: 4, kind: input, shape index: {}]
  %s5 = inlined_call_operand.vmem [shape: f32[4,256], index: 5, kind: input, shape index: {}]
  %s6 = inlined_call_operand.vmem [shape: f32[128,6], index: 6, kind: input, shape index: {}]
  %s7 = inlined_call_operand.vmem [shape: f32[6,128], index: 7, kind: input, shape index: {}]
  %s8 = inlined_call_operand.vmem [shape: f32[1,128], index: 8, kind: input, shape index: {}]
  %s9 = inlined_call_operand.vmem [shape: f32[14,128], index: 9, kind: input, shape index: {}]
  %s10 = inlined_call_operand.vmem [shape: f32[2,256], index: 10, kind: output, shape index: {0}]
  %s11 = inlined_call_operand.vmem [shape: f32[14,128], index: 11, kind: output, shape index: {1}]
  %s12 = inlined_call_operand.vmem [shape: f32[2,128], index: 12, kind: output, shape index: {2}]
  %13 = xla_tuple %s10, %s11, %s12
  %s14 = sld [smem:[#allocation0]]
  $region66: #{prob_concept_forward.1} parent=0
    _
  %s16 = ssub.s32 1, %s14
  %s17 = scalar_select 0, %s16, %s14
  %18 = sst [smem:[#allocation2]] %s0
  %19 = sst [smem:[#allocation3]] %s1
  // Predicated region
  $region2: #{prob_concept_forward.1} parent=0 // pred_check
    _
  $region3: #{prob_concept_forward.1} parent=0 // pred_check_branch
    %21 = sbr.rel (0) target = $region5
  $region4: #{prob_concept_forward.1} parent=0 // pred_region
    _
  $region5: #{prob_concept_forward.1} parent=0 // pred_fallthru
    _
  // Predicated region
  $region6: #{prob_concept_forward.1} parent=0 // pred_check
    _
  $region7: #{prob_concept_forward.1} parent=0 // pred_check_branch
    %23 = sbr.rel (0) target = $region9
  $region8: #{prob_concept_forward.1} parent=0 // pred_region
    _
  $region9: #{prob_concept_forward.1} parent=0 // pred_fallthru
    _
  // Predicated region
  $region10: #{prob_concept_forward.1} parent=0 // pred_check
    _
  $region11: #{prob_concept_forward.1} parent=0 // pred_check_branch
    %25 = sbr.rel (0) target = $region13
  $region12: #{prob_concept_forward.1} parent=0 // pred_region
    _
  $region13: #{prob_concept_forward.1} parent=0 // pred_fallthru
    _
  // Predicated region
  $region14: #{prob_concept_forward.1} parent=0 // pred_check
    _
  $region15: #{prob_concept_forward.1} parent=0 // pred_check_branch
    %27 = sbr.rel (0) target = $region17
  $region16: #{prob_concept_forward.1} parent=0 // pred_region
    _
  $region17: #{prob_concept_forward.1} parent=0 // pred_fallthru
    _
  // Predicated region
  $region18: #{prob_concept_forward.1} parent=0 // pred_check
    _
  $region19: #{prob_concept_forward.1} parent=0 // pred_check_branch
    %29 = sbr.rel (0) target = $region21
  $region20: #{prob_concept_forward.1} parent=0 // pred_region
    _
  $region21: #{prob_concept_forward.1} parent=0 // pred_fallthru
    _
  // Predicated region
  $region22: #{prob_concept_forward.1} parent=0 // pred_check
    _
  $region23: #{prob_concept_forward.1} parent=0 // pred_check_branch
    %31 = sbr.rel (0) target = $region25
  $region24: #{prob_concept_forward.1} parent=0 // pred_region
    _
  $region25: #{prob_concept_forward.1} parent=0 // pred_fallthru
    _
  // Predicated region
  $region26: #{prob_concept_forward.1} parent=0 // pred_check
    _
  $region27: #{prob_concept_forward.1} parent=0 // pred_check_branch
    %33 = sbr.rel (0) target = $region29
  $region28: #{prob_concept_forward.1} parent=0 // pred_region
    _
  $region29: #{prob_concept_forward.1} parent=0 // pred_fallthru
    _
  // Predicated region
  $region30: #{prob_concept_forward.1} parent=0 // pred_check
    _
  $region31: #{prob_concept_forward.1} parent=0 // pred_check_branch
    %35 = sbr.rel (0) target = $region33
  $region32: #{prob_concept_forward.1} parent=0 // pred_region
    _
  $region33: #{prob_concept_forward.1} parent=0 // pred_fallthru
    _
  // Predicated region
  $region34: #{prob_concept_forward.1} parent=0 // pred_check
    _
  $region35: #{prob_concept_forward.1} parent=0 // pred_check_branch
    %37 = sbr.rel (0) target = $region37
  $region36: #{prob_concept_forward.1} parent=0 // pred_region
    _
  $region37: #{prob_concept_forward.1} parent=0 // pred_fallthru
    _
  // Predicated region
  $region38: #{prob_concept_forward.1} parent=0 // pred_check
    _
  $region39: #{prob_concept_forward.1} parent=0 // pred_check_branch
    %39 = sbr.rel (0) target = $region41
  $region40: #{prob_concept_forward.1} parent=0 // pred_region
    _
  $region41: #{prob_concept_forward.1} parent=0 // pred_fallthru
    _
  %v40 = vld [vmem:[%s2] sm:$0x3]
  %v41 = vld [vmem:[%s5] ss:$4 sm:$0x3]
  %s42 = scalar_lea.vmem %s5, 1
  %v43 = vld [vmem:[%s42] ss:$4 sm:$0x3]
  %s44 = scalar_lea.vmem %s5, 2
  %v45 = vld [vmem:[%s44] ss:$4 sm:$0x3]
  %s46 = scalar_lea.vmem %s5, 3
  %v47 = vld [vmem:[%s46] ss:$4 sm:$0x3]
  %v48 = vld [vmem:[%s3] sm:$0xff]
  %v49 = vld [vmem:[%s3 + $0x8] sm:$0xff]
  %v50 = vld [vmem:[%s3 + $0x10] sm:$0xff]
  %v51 = vld [vmem:[%s3 + $0x18] sm:$0xff]
  %v52 = vld [vmem:[%s3 + $0x20] sm:$0xff]
  %v53 = vld [vmem:[%s3 + $0x28] sm:$0xff]
  %v54 = vld [vmem:[%s3 + $0x30] sm:$0xff]
  %v55 = vld [vmem:[%s3 + $0x38] sm:$0xff]
  %v56 = vld [vmem:[%s3 + $0x40] sm:$0xff]
  %v57 = vld [vmem:[%s3 + $0x48] sm:$0xff]
  %v58 = vld [vmem:[%s3 + $0x50] sm:$0xff]
  %v59 = vld [vmem:[%s3 + $0x58] sm:$0xff]
  %v60 = vld [vmem:[%s3 + $0x60] sm:$0xff]
  %v61 = vld [vmem:[%s3 + $0x68] sm:$0xff]
  %v62 = vld [vmem:[%s3 + $0x70] sm:$0xff]
  %v63 = vld [vmem:[%s3 + $0x78] sm:$0xff]
  %v65 = vlaneseq
  %v66 = vshrl.u32 %v65, 7
  %v67 = vsub.s32 0, %v66
  %v68 = vrot.slane %v41, %v67
  %v69 = vlaneseq
  %v70 = vshrl.u32 %v69, 7
  %v71 = vsub.s32 1, %v70
  %v72 = vrot.slane %v41, %v71
  %vm75 = vcmask 523264
  %v77 = vsel %vm75, %v40, 0
  %79 = vmatprep.subr.mxu0 %v49
  %80 = vmatpush1.msra.mxu0 %v48
  %81 = vmatprep.subr.mxu0 %v51
  %82 = vmatpush1.msra.mxu0 %v50
  %83 = vmatprep.subr.mxu0 %v53
  %84 = vmatpush1.msra.mxu0 %v52
  %85 = vmatprep.subr.mxu0 %v55
  %86 = vmatpush1.msra.mxu0 %v54
  %87 = vmatprep.subr.mxu0 %v57
  %88 = vmatpush1.msra.mxu0 %v56
  %89 = vmatprep.subr.mxu0 %v59
  %90 = vmatpush1.msra.mxu0 %v58
  %91 = vmatprep.subr.mxu0 %v61
  %92 = vmatpush1.msra.mxu0 %v60
  %93 = vmatprep.subr.mxu0 %v63
  %94 = vmatpush1.msra.mxu0 %v62
  %95 = vmatprep.subr.mxu0 0.0
  %96 = vmatpush1.msra.mxu0 0.0
  %97 = vmatprep.subr.mxu0 0.0
  %98 = vmatpush1.msra.mxu0 0.0
  %99 = vmatprep.subr.mxu0 0.0
  %100 = vmatpush1.msra.mxu0 0.0
  %101 = vmatprep.subr.mxu0 0.0
  %102 = vmatpush1.msra.mxu0 0.0
  %103 = vmatprep.subr.mxu0 0.0
  %104 = vmatpush1.msra.mxu0 0.0
  %105 = vmatprep.subr.mxu0 0.0
  %106 = vmatpush1.msra.mxu0 0.0
  %107 = vmatprep.subr.mxu0 0.0
  %108 = vmatpush1.msra.mxu0 0.0
  %109 = vmatprep.subr.mxu0 0.0
  %110 = vmatpush1.msra.mxu0 0.0
  %111 = vmatprep.subr.mxu0 0.0
  %112 = vmatpush1.msra.mxu0 0.0
  %113 = vmatprep.subr.mxu0 0.0
  %114 = vmatpush1.msra.mxu0 0.0
  %115 = vmatprep.subr.mxu0 0.0
  %116 = vmatpush1.msra.mxu0 0.0
  %117 = vmatprep.subr.mxu0 0.0
  %118 = vmatpush1.msra.mxu0 0.0
  %119 = vmatprep.subr.mxu0 0.0
  %120 = vmatpush1.msra.mxu0 0.0
  %121 = vmatprep.subr.mxu0 0.0
  %122 = vmatpush1.msra.mxu0 0.0
  %123 = vmatprep.subr.mxu0 0.0
  %124 = vmatpush1.msra.mxu0 0.0
  %125 = vmatprep.subr.mxu0 0.0
  %126 = vmatpush1.msra.mxu0 0.0
  %127 = vmatprep.subr.mxu0 0.0
  %128 = vmatpush1.msra.mxu0 0.0
  %129 = vmatprep.subr.mxu0 0.0
  %130 = vmatpush1.msra.mxu0 0.0
  %131 = vmatprep.subr.mxu0 0.0
  %132 = vmatpush1.msra.mxu0 0.0
  %133 = vmatprep.subr.mxu0 0.0
  %134 = vmatpush1.msra.mxu0 0.0
  %135 = vmatprep.subr.mxu0 0.0
  %136 = vmatpush1.msra.mxu0 0.0
  %137 = vmatprep.subr.mxu0 0.0
  %138 = vmatpush1.msra.mxu0 0.0
  %139 = vmatprep.subr.mxu0 0.0
  %140 = vmatpush1.msra.mxu0 0.0
  %141 = vmatprep.subr.mxu0 0.0
  %142 = vmatpush1.msra.mxu0 0.0
  %143 = vmatprep.mubr.f32.mxu0 0.0
  %144 = vmatmul.mubr.f32.gmra.mrb[0].mxu0 %v77
  %v145 = vpop.f32.mrb[0].mxu0
  %v146 = vadd.f32 %v68, %v145
  %v147 = vpop.f32.mrb[0].mxu0
  %v148 = vadd.f32 %v72, %v147
  %149 = vdwg.mxu0
  %vm150 = vcmp.ge.f32.partialorder %v146, 0.0
  %vm151 = vcmp.ge.f32.partialorder %v148, 0.0
  %v153 = vlaneseq
  %v154 = vshrl.u32 %v153, 7
  %v155 = vsub.s32 0, %v154
  %v156 = vrot.slane %v47, %v155
  %v157 = vlaneseq
  %v158 = vshrl.u32 %v157, 7
  %v159 = vsub.s32 1, %v158
  %v160 = vrot.slane %v47, %v159
  %v163 = vmul.f32 %v146, %v156
  %v164 = vmul.f32 %v148, %v160
  %v165 = vsel %vm150, %v146, %v163
  %v166 = vsel %vm151, %v148, %v164
  %v167 = vld [vmem:[%s4] sm:$0xff]
  %v168 = vld [vmem:[%s4 + $0x8] sm:$0xff]
  %v169 = vld [vmem:[%s4 + $0x10] sm:$0xff]
  %v170 = vld [vmem:[%s4 + $0x18] sm:$0xff]
  %v171 = vld [vmem:[%s4 + $0x20] sm:$0xff]
  %v172 = vld [vmem:[%s4 + $0x28] sm:$0xff]
  %v173 = vld [vmem:[%s4 + $0x30] sm:$0xff]
  %v174 = vld [vmem:[%s4 + $0x38] sm:$0xff]
  %v175 = vld [vmem:[%s4 + $0x40] sm:$0xff]
  %v176 = vld [vmem:[%s4 + $0x48] sm:$0xff]
  %v177 = vld [vmem:[%s4 + $0x50] sm:$0xff]
  %v178 = vld [vmem:[%s4 + $0x58] sm:$0xff]
  %v179 = vld [vmem:[%s4 + $0x60] sm:$0xff]
  %v180 = vld [vmem:[%s4 + $0x68] sm:$0xff]
  %v181 = vld [vmem:[%s4 + $0x70] sm:$0xff]
  %v182 = vld [vmem:[%s4 + $0x78] sm:$0xff]
  %v183 = vld [vmem:[%s4 + $0x80] sm:$0xff]
  %v184 = vld [vmem:[%s4 + $0x88] sm:$0xff]
  %v185 = vld [vmem:[%s4 + $0x90] sm:$0xff]
  %v186 = vld [vmem:[%s4 + $0x98] sm:$0xff]
  %v187 = vld [vmem:[%s4 + $0xa0] sm:$0xff]
  %v188 = vld [vmem:[%s4 + $0xa8] sm:$0xff]
  %v189 = vld [vmem:[%s4 + $0xb0] sm:$0xff]
  %v190 = vld [vmem:[%s4 + $0xb8] sm:$0xff]
  %v191 = vld [vmem:[%s4 + $0xc0] sm:$0xff]
  %v192 = vld [vmem:[%s4 + $0xc8] sm:$0xff]
  %v193 = vld [vmem:[%s4 + $0xd0] sm:$0xff]
  %v194 = vld [vmem:[%s4 + $0xd8] sm:$0xff]
  %v195 = vld [vmem:[%s4 + $0xe0] sm:$0xff]
  %v196 = vld [vmem:[%s4 + $0xe8] sm:$0xff]
  %v197 = vld [vmem:[%s4 + $0xf0] sm:$0xff]
  %v198 = vld [vmem:[%s4 + $0xf8] sm:$0xff]
  %v199 = vld [vmem:[%s4 + $0x100] sm:$0xff]
  %v200 = vld [vmem:[%s4 + $0x108] sm:$0xff]
  %v201 = vld [vmem:[%s4 + $0x110] sm:$0xff]
  %v202 = vld [vmem:[%s4 + $0x118] sm:$0xff]
  %v203 = vld [vmem:[%s4 + $0x120] sm:$0xff]
  %v204 = vld [vmem:[%s4 + $0x128] sm:$0xff]
  %v205 = vld [vmem:[%s4 + $0x130] sm:$0xff]
  %v206 = vld [vmem:[%s4 + $0x138] sm:$0xff]
  %v207 = vld [vmem:[%s4 + $0x140] sm:$0xff]
  %v208 = vld [vmem:[%s4 + $0x148] sm:$0xff]
  %v209 = vld [vmem:[%s4 + $0x150] sm:$0xff]
  %v210 = vld [vmem:[%s4 + $0x158] sm:$0xff]
  %v211 = vld [vmem:[%s4 + $0x160] sm:$0xff]
  %v212 = vld [vmem:[%s4 + $0x168] sm:$0xff]
  %v213 = vld [vmem:[%s4 + $0x170] sm:$0xff]
  %v214 = vld [vmem:[%s4 + $0x178] sm:$0xff]
  %v215 = vld [vmem:[%s4 + $0x180] sm:$0xff]
  %v216 = vld [vmem:[%s4 + $0x188] sm:$0xff]
  %v217 = vld [vmem:[%s4 + $0x190] sm:$0xff]
  %v218 = vld [vmem:[%s4 + $0x198] sm:$0xff]
  %v219 = vld [vmem:[%s4 + $0x1a0] sm:$0xff]
  %v220 = vld [vmem:[%s4 + $0x1a8] sm:$0xff]
  %v221 = vld [vmem:[%s4 + $0x1b0] sm:$0xff]
  %v222 = vld [vmem:[%s4 + $0x1b8] sm:$0xff]
  %v223 = vld [vmem:[%s4 + $0x1c0] sm:$0xff]
  %v224 = vld [vmem:[%s4 + $0x1c8] sm:$0xff]
  %v225 = vld [vmem:[%s4 + $0x1d0] sm:$0xff]
  %v226 = vld [vmem:[%s4 + $0x1d8] sm:$0xff]
  %v227 = vld [vmem:[%s4 + $0x1e0] sm:$0xff]
  %v228 = vld [vmem:[%s4 + $0x1e8] sm:$0xff]
  %v229 = vld [vmem:[%s4 + $0x1f0] sm:$0xff]
  %v230 = vld [vmem:[%s4 + $0x1f8] sm:$0xff]
  %v232 = vlaneseq
  %v233 = vshrl.u32 %v232, 7
  %v234 = vsub.s32 0, %v233
  %v235 = vrot.slane %v43, %v234
  %v236 = vlaneseq
  %v237 = vshrl.u32 %v236, 7
  %v238 = vsub.s32 1, %v237
  %v239 = vrot.slane %v43, %v238
  %242 = vmatprep.subr.mxu0 %v168
  %243 = vmatpush1.msra.mxu0 %v167
  %244 = vmatprep.subr.mxu0 %v170
  %245 = vmatpush1.msra.mxu0 %v169
  %246 = vmatprep.subr.mxu0 %v172
  %247 = vmatpush1.msra.mxu0 %v171
  %248 = vmatprep.subr.mxu0 %v174
  %249 = vmatpush1.msra.mxu0 %v173
  %250 = vmatprep.subr.mxu0 %v176
  %251 = vmatpush1.msra.mxu0 %v175
  %252 = vmatprep.subr.mxu0 %v178
  %253 = vmatpush1.msra.mxu0 %v177
  %254 = vmatprep.subr.mxu0 %v180
  %255 = vmatpush1.msra.mxu0 %v179
  %256 = vmatprep.subr.mxu0 %v182
  %257 = vmatpush1.msra.mxu0 %v181
  %258 = vmatprep.subr.mxu0 %v184
  %259 = vmatpush1.msra.mxu0 %v183
  %260 = vmatprep.subr.mxu0 %v186
  %261 = vmatpush1.msra.mxu0 %v185
  %262 = vmatprep.subr.mxu0 %v188
  %263 = vmatpush1.msra.mxu0 %v187
  %264 = vmatprep.subr.mxu0 %v190
  %265 = vmatpush1.msra.mxu0 %v189
  %266 = vmatprep.subr.mxu0 %v192
  %267 = vmatpush1.msra.mxu0 %v191
  %268 = vmatprep.subr.mxu0 %v194
  %269 = vmatpush1.msra.mxu0 %v193
  %270 = vmatprep.subr.mxu0 %v196
  %271 = vmatpush1.msra.mxu0 %v195
  %272 = vmatprep.subr.mxu0 %v198
  %273 = vmatpush1.msra.mxu0 %v197
  %274 = vmatprep.subr.mxu0 %v200
  %275 = vmatpush1.msra.mxu0 %v199
  %276 = vmatprep.subr.mxu0 %v202
  %277 = vmatpush1.msra.mxu0 %v201
  %278 = vmatprep.subr.mxu0 %v204
  %279 = vmatpush1.msra.mxu0 %v203
  %280 = vmatprep.subr.mxu0 %v206
  %281 = vmatpush1.msra.mxu0 %v205
  %282 = vmatprep.subr.mxu0 %v208
  %283 = vmatpush1.msra.mxu0 %v207
  %284 = vmatprep.subr.mxu0 %v210
  %285 = vmatpush1.msra.mxu0 %v209
  %286 = vmatprep.subr.mxu0 %v212
  %287 = vmatpush1.msra.mxu0 %v211
  %288 = vmatprep.subr.mxu0 %v214
  %289 = vmatpush1.msra.mxu0 %v213
  %290 = vmatprep.subr.mxu0 %v216
  %291 = vmatpush1.msra.mxu0 %v215
  %292 = vmatprep.subr.mxu0 %v218
  %293 = vmatpush1.msra.mxu0 %v217
  %294 = vmatprep.subr.mxu0 %v220
  %295 = vmatpush1.msra.mxu0 %v219
  %296 = vmatprep.subr.mxu0 %v222
  %297 = vmatpush1.msra.mxu0 %v221
  %298 = vmatprep.subr.mxu0 %v224
  %299 = vmatpush1.msra.mxu0 %v223
  %300 = vmatprep.subr.mxu0 %v226
  %301 = vmatpush1.msra.mxu0 %v225
  %302 = vmatprep.subr.mxu0 %v228
  %303 = vmatpush1.msra.mxu0 %v227
  %304 = vmatprep.subr.mxu0 %v230
  %305 = vmatpush1.msra.mxu0 %v229
  %306 = vmatprep.mubr.f32.mxu0 %v166
  %307 = vmatmul.mubr.f32.gmra.mrb[0].mxu0 %v165
  %v308 = vpop.f32.mrb[0].mxu0
  %v309 = vadd.f32 %v235, %v308
  %v310 = vpop.f32.mrb[0].mxu0
  %v311 = vadd.f32 %v239, %v310
  %312 = vdwg.mxu0
  %vm313 = vcmp.ge.f32.partialorder %v309, 0.0
  %vm314 = vcmp.ge.f32.partialorder %v311, 0.0
  %v315 = vmul.f32 %v309, %v156
  %v316 = vmul.f32 %v311, %v160
  %v317 = vsel %vm313, %v309, %v315
  %v318 = vsel %vm314, %v311, %v316
  %s319 = scalar_lea.vmem %s4, 512
  %v320 = vld [vmem:[%s319] sm:$0xff]
  %v321 = vld [vmem:[%s319 + $0x8] sm:$0xff]
  %v322 = vld [vmem:[%s319 + $0x10] sm:$0xff]
  %v323 = vld [vmem:[%s319 + $0x18] sm:$0xff]
  %v324 = vld [vmem:[%s319 + $0x20] sm:$0xff]
  %v325 = vld [vmem:[%s319 + $0x28] sm:$0xff]
  %v326 = vld [vmem:[%s319 + $0x30] sm:$0xff]
  %v327 = vld [vmem:[%s319 + $0x38] sm:$0xff]
  %v328 = vld [vmem:[%s319 + $0x40] sm:$0xff]
  %v329 = vld [vmem:[%s319 + $0x48] sm:$0xff]
  %v330 = vld [vmem:[%s319 + $0x50] sm:$0xff]
  %v331 = vld [vmem:[%s319 + $0x58] sm:$0xff]
  %v332 = vld [vmem:[%s319 + $0x60] sm:$0xff]
  %v333 = vld [vmem:[%s319 + $0x68] sm:$0xff]
  %v334 = vld [vmem:[%s319 + $0x70] sm:$0xff]
  %v335 = vld [vmem:[%s319 + $0x78] sm:$0xff]
  %v336 = vld [vmem:[%s319 + $0x80] sm:$0xff]
  %v337 = vld [vmem:[%s319 + $0x88] sm:$0xff]
  %v338 = vld [vmem:[%s319 + $0x90] sm:$0xff]
  %v339 = vld [vmem:[%s319 + $0x98] sm:$0xff]
  %v340 = vld [vmem:[%s319 + $0xa0] sm:$0xff]
  %v341 = vld [vmem:[%s319 + $0xa8] sm:$0xff]
  %v342 = vld [vmem:[%s319 + $0xb0] sm:$0xff]
  %v343 = vld [vmem:[%s319 + $0xb8] sm:$0xff]
  %v344 = vld [vmem:[%s319 + $0xc0] sm:$0xff]
  %v345 = vld [vmem:[%s319 + $0xc8] sm:$0xff]
  %v346 = vld [vmem:[%s319 + $0xd0] sm:$0xff]
  %v347 = vld [vmem:[%s319 + $0xd8] sm:$0xff]
  %v348 = vld [vmem:[%s319 + $0xe0] sm:$0xff]
  %v349 = vld [vmem:[%s319 + $0xe8] sm:$0xff]
  %v350 = vld [vmem:[%s319 + $0xf0] sm:$0xff]
  %v351 = vld [vmem:[%s319 + $0xf8] sm:$0xff]
  %v352 = vld [vmem:[%s319 + $0x100] sm:$0xff]
  %v353 = vld [vmem:[%s319 + $0x108] sm:$0xff]
  %v354 = vld [vmem:[%s319 + $0x110] sm:$0xff]
  %v355 = vld [vmem:[%s319 + $0x118] sm:$0xff]
  %v356 = vld [vmem:[%s319 + $0x120] sm:$0xff]
  %v357 = vld [vmem:[%s319 + $0x128] sm:$0xff]
  %v358 = vld [vmem:[%s319 + $0x130] sm:$0xff]
  %v359 = vld [vmem:[%s319 + $0x138] sm:$0xff]
  %v360 = vld [vmem:[%s319 + $0x140] sm:$0xff]
  %v361 = vld [vmem:[%s319 + $0x148] sm:$0xff]
  %v362 = vld [vmem:[%s319 + $0x150] sm:$0xff]
  %v363 = vld [vmem:[%s319 + $0x158] sm:$0xff]
  %v364 = vld [vmem:[%s319 + $0x160] sm:$0xff]
  %v365 = vld [vmem:[%s319 + $0x168] sm:$0xff]
  %v366 = vld [vmem:[%s319 + $0x170] sm:$0xff]
  %v367 = vld [vmem:[%s319 + $0x178] sm:$0xff]
  %v368 = vld [vmem:[%s319 + $0x180] sm:$0xff]
  %v369 = vld [vmem:[%s319 + $0x188] sm:$0xff]
  %v370 = vld [vmem:[%s319 + $0x190] sm:$0xff]
  %v371 = vld [vmem:[%s319 + $0x198] sm:$0xff]
  %v372 = vld [vmem:[%s319 + $0x1a0] sm:$0xff]
  %v373 = vld [vmem:[%s319 + $0x1a8] sm:$0xff]
  %v374 = vld [vmem:[%s319 + $0x1b0] sm:$0xff]
  %v375 = vld [vmem:[%s319 + $0x1b8] sm:$0xff]
  %v376 = vld [vmem:[%s319 + $0x1c0] sm:$0xff]
  %v377 = vld [vmem:[%s319 + $0x1c8] sm:$0xff]
  %v378 = vld [vmem:[%s319 + $0x1d0] sm:$0xff]
  %v379 = vld [vmem:[%s319 + $0x1d8] sm:$0xff]
  %v380 = vld [vmem:[%s319 + $0x1e0] sm:$0xff]
  %v381 = vld [vmem:[%s319 + $0x1e8] sm:$0xff]
  %v382 = vld [vmem:[%s319 + $0x1f0] sm:$0xff]
  %v383 = vld [vmem:[%s319 + $0x1f8] sm:$0xff]
  %v385 = vlaneseq
  %v386 = vshrl.u32 %v385, 7
  %v387 = vsub.s32 0, %v386
  %v388 = vrot.slane %v45, %v387
  %v389 = vlaneseq
  %v390 = vshrl.u32 %v389, 7
  %v391 = vsub.s32 1, %v390
  %v392 = vrot.slane %v45, %v391
  %395 = vmatprep.subr.mxu0 %v321
  %396 = vmatpush1.msra.mxu0 %v320
  %397 = vmatprep.subr.mxu0 %v323
  %398 = vmatpush1.msra.mxu0 %v322
  %399 = vmatprep.subr.mxu0 %v325
  %400 = vmatpush1.msra.mxu0 %v324
  %401 = vmatprep.subr.mxu0 %v327
  %402 = vmatpush1.msra.mxu0 %v326
  %403 = vmatprep.subr.mxu0 %v329
  %404 = vmatpush1.msra.mxu0 %v328
  %405 = vmatprep.subr.mxu0 %v331
  %406 = vmatpush1.msra.mxu0 %v330
  %407 = vmatprep.subr.mxu0 %v333
  %408 = vmatpush1.msra.mxu0 %v332
  %409 = vmatprep.subr.mxu0 %v335
  %410 = vmatpush1.msra.mxu0 %v334
  %411 = vmatprep.subr.mxu0 %v337
  %412 = vmatpush1.msra.mxu0 %v336
  %413 = vmatprep.subr.mxu0 %v339
  %414 = vmatpush1.msra.mxu0 %v338
  %415 = vmatprep.subr.mxu0 %v341
  %416 = vmatpush1.msra.mxu0 %v340
  %417 = vmatprep.subr.mxu0 %v343
  %418 = vmatpush1.msra.mxu0 %v342
  %419 = vmatprep.subr.mxu0 %v345
  %420 = vmatpush1.msra.mxu0 %v344
  %421 = vmatprep.subr.mxu0 %v347
  %422 = vmatpush1.msra.mxu0 %v346
  %423 = vmatprep.subr.mxu0 %v349
  %424 = vmatpush1.msra.mxu0 %v348
  %425 = vmatprep.subr.mxu0 %v351
  %426 = vmatpush1.msra.mxu0 %v350
  %427 = vmatprep.subr.mxu0 %v353
  %428 = vmatpush1.msra.mxu0 %v352
  %429 = vmatprep.subr.mxu0 %v355
  %430 = vmatpush1.msra.mxu0 %v354
  %431 = vmatprep.subr.mxu0 %v357
  %432 = vmatpush1.msra.mxu0 %v356
  %433 = vmatprep.subr.mxu0 %v359
  %434 = vmatpush1.msra.mxu0 %v358
  %435 = vmatprep.subr.mxu0 %v361
  %436 = vmatpush1.msra.mxu0 %v360
  %437 = vmatprep.subr.mxu0 %v363
  %438 = vmatpush1.msra.mxu0 %v362
  %439 = vmatprep.subr.mxu0 %v365
  %440 = vmatpush1.msra.mxu0 %v364
  %441 = vmatprep.subr.mxu0 %v367
  %442 = vmatpush1.msra.mxu0 %v366
  %443 = vmatprep.subr.mxu0 %v369
  %444 = vmatpush1.msra.mxu0 %v368
  %445 = vmatprep.subr.mxu0 %v371
  %446 = vmatpush1.msra.mxu0 %v370
  %447 = vmatprep.subr.mxu0 %v373
  %448 = vmatpush1.msra.mxu0 %v372
  %449 = vmatprep.subr.mxu0 %v375
  %450 = vmatpush1.msra.mxu0 %v374
  %451 = vmatprep.subr.mxu0 %v377
  %452 = vmatpush1.msra.mxu0 %v376
  %453 = vmatprep.subr.mxu0 %v379
  %454 = vmatpush1.msra.mxu0 %v378
  %455 = vmatprep.subr.mxu0 %v381
  %456 = vmatpush1.msra.mxu0 %v380
  %457 = vmatprep.subr.mxu0 %v383
  %458 = vmatpush1.msra.mxu0 %v382
  %459 = vmatprep.mubr.f32.mxu0 %v318
  %460 = vmatmul.mubr.f32.gmra.mrb[0].mxu0 %v317
  %v461 = vpop.f32.mrb[0].mxu0
  %v462 = vadd.f32 %v388, %v461
  %v463 = vpop.f32.mrb[0].mxu0
  %v464 = vadd.f32 %v392, %v463
  %465 = vdwg.mxu0
  %v466 = vmin.f32 %v464, 10.0
  %v467 = vld [vmem:[%s6] sm:$0xff]
  %v468 = vld [vmem:[%s6 + $0x8] sm:$0xff]
  %v469 = vld [vmem:[%s6 + $0x10] sm:$0xff]
  %v470 = vld [vmem:[%s6 + $0x18] sm:$0xff]
  %v471 = vld [vmem:[%s6 + $0x20] sm:$0xff]
  %v472 = vld [vmem:[%s6 + $0x28] sm:$0xff]
  %v473 = vld [vmem:[%s6 + $0x30] sm:$0xff]
  %v474 = vld [vmem:[%s6 + $0x38] sm:$0xff]
  %v475 = vld [vmem:[%s6 + $0x40] sm:$0xff]
  %v476 = vld [vmem:[%s6 + $0x48] sm:$0xff]
  %v477 = vld [vmem:[%s6 + $0x50] sm:$0xff]
  %v478 = vld [vmem:[%s6 + $0x58] sm:$0xff]
  %v479 = vld [vmem:[%s6 + $0x60] sm:$0xff]
  %v480 = vld [vmem:[%s6 + $0x68] sm:$0xff]
  %v481 = vld [vmem:[%s6 + $0x70] sm:$0xff]
  %v482 = vld [vmem:[%s6 + $0x78] sm:$0xff]
  %v483 = vld [vmem:[%s7] sm:$0x3f]
  %v484 = vmul.f32 %v462, %v462
  %485 = vmatprep.subr.mxu0 0.0
  %486 = vmatpush1.msra.mxu0 %v467
  %487 = vmatprep.subr.mxu0 0.0
  %488 = vmatpush1.msra.mxu0 %v468
  %489 = vmatprep.subr.mxu0 0.0
  %490 = vmatpush1.msra.mxu0 %v469
  %491 = vmatprep.subr.mxu0 0.0
  %492 = vmatpush1.msra.mxu0 %v470
  %493 = vmatprep.subr.mxu0 0.0
  %494 = vmatpush1.msra.mxu0 %v471
  %495 = vmatprep.subr.mxu0 0.0
  %496 = vmatpush1.msra.mxu0 %v472
  %497 = vmatprep.subr.mxu0 0.0
  %498 = vmatpush1.msra.mxu0 %v473
  %499 = vmatprep.subr.mxu0 0.0
  %500 = vmatpush1.msra.mxu0 %v474
  %501 = vmatprep.subr.mxu0 0.0
  %502 = vmatpush1.msra.mxu0 %v475
  %503 = vmatprep.subr.mxu0 0.0
  %504 = vmatpush1.msra.mxu0 %v476
  %505 = vmatprep.subr.mxu0 0.0
  %506 = vmatpush1.msra.mxu0 %v477
  %507 = vmatprep.subr.mxu0 0.0
  %508 = vmatpush1.msra.mxu0 %v478
  %509 = vmatprep.subr.mxu0 0.0
  %510 = vmatpush1.msra.mxu0 %v479
  %511 = vmatprep.subr.mxu0 0.0
  %512 = vmatpush1.msra.mxu0 %v480
  %513 = vmatprep.subr.mxu0 0.0
  %514 = vmatpush1.msra.mxu0 %v481
  %515 = vmatprep.subr.mxu0 0.0
  %516 = vmatpush1.msra.mxu0 %v482
  %517 = vmatprep.subr.mxu0 0.0
  %518 = vmatpush1.msra.mxu0 0.0
  %519 = vmatprep.subr.mxu0 0.0
  %520 = vmatpush1.msra.mxu0 0.0
  %521 = vmatprep.subr.mxu0 0.0
  %522 = vmatpush1.msra.mxu0 0.0
  %523 = vmatprep.subr.mxu0 0.0
  %524 = vmatpush1.msra.mxu0 0.0
  %525 = vmatprep.subr.mxu0 0.0
  %526 = vmatpush1.msra.mxu0 0.0
  %527 = vmatprep.subr.mxu0 0.0
  %528 = vmatpush1.msra.mxu0 0.0
  %529 = vmatprep.subr.mxu0 0.0
  %530 = vmatpush1.msra.mxu0 0.0
  %531 = vmatprep.subr.mxu0 0.0
  %532 = vmatpush1.msra.mxu0 0.0
  %533 = vmatprep.subr.mxu0 0.0
  %534 = vmatpush1.msra.mxu0 0.0
  %535 = vmatprep.subr.mxu0 0.0
  %536 = vmatpush1.msra.mxu0 0.0
  %537 = vmatprep.subr.mxu0 0.0
  %538 = vmatpush1.msra.mxu0 0.0
  %539 = vmatprep.subr.mxu0 0.0
  %540 = vmatpush1.msra.mxu0 0.0
  %541 = vmatprep.subr.mxu0 0.0
  %542 = vmatpush1.msra.mxu0 0.0
  %543 = vmatprep.subr.mxu0 0.0
  %544 = vmatpush1.msra.mxu0 0.0
  %545 = vmatprep.subr.mxu0 0.0
  %546 = vmatpush1.msra.mxu0 0.0
  %547 = vmatprep.subr.mxu0 0.0
  %548 = vmatpush1.msra.mxu0 0.0
  %549 = vmatprep.mubr.f32.mxu0 0.0
  %550 = vmatmul.mubr.f32.gmra.mrb[0].mxu0 %v484
  %v551 = vpop.f32.mrb[0].mxu0
  %v552 = vadd.f32 0.0, %v551
  %v553 = vpop.f32.mrb[0].mxu0
  %554 = vdwg.mxu0
  %v555 = vmax.f32 %v552, 1e-24
  %v556 = vrsqrt.pop %v555
  %vm557 = vcmask 48128
  %v559 = vsel %vm557, %v556, 0
  %vm561 = vcmask 1045504
  %v563 = vsel %vm561, %v483, 0
  %565 = vmatprep.subr.mxu0 0.0
  %566 = vmatpush1.msra.mxu0 %v563
  %567 = vmatprep.subr.mxu0 0.0
  %568 = vmatpush1.msra.mxu0 0.0
  %569 = vmatprep.subr.mxu0 0.0
  %570 = vmatpush1.msra.mxu0 0.0
  %571 = vmatprep.subr.mxu0 0.0
  %572 = vmatpush1.msra.mxu0 0.0
  %573 = vmatprep.subr.mxu0 0.0
  %574 = vmatpush1.msra.mxu0 0.0
  %575 = vmatprep.subr.mxu0 0.0
  %576 = vmatpush1.msra.mxu0 0.0
  %577 = vmatprep.subr.mxu0 0.0
  %578 = vmatpush1.msra.mxu0 0.0
  %579 = vmatprep.subr.mxu0 0.0
  %580 = vmatpush1.msra.mxu0 0.0
  %581 = vmatprep.subr.mxu0 0.0
  %582 = vmatpush1.msra.mxu0 0.0
  %583 = vmatprep.subr.mxu0 0.0
  %584 = vmatpush1.msra.mxu0 0.0
  %585 = vmatprep.subr.mxu0 0.0
  %586 = vmatpush1.msra.mxu0 0.0
  %587 = vmatprep.subr.mxu0 0.0
  %588 = vmatpush1.msra.mxu0 0.0
  %589 = vmatprep.subr.mxu0 0.0
  %590 = vmatpush1.msra.mxu0 0.0
  %591 = vmatprep.subr.mxu0 0.0
  %592 = vmatpush1.msra.mxu0 0.0
  %593 = vmatprep.subr.mxu0 0.0
  %594 = vmatpush1.msra.mxu0 0.0
  %595 = vmatprep.subr.mxu0 0.0
  %596 = vmatpush1.msra.mxu0 0.0
  %597 = vmatprep.subr.mxu0 0.0
  %598 = vmatpush1.msra.mxu0 0.0
  %599 = vmatprep.subr.mxu0 0.0
  %600 = vmatpush1.msra.mxu0 0.0
  %601 = vmatprep.subr.mxu0 0.0
  %602 = vmatpush1.msra.mxu0 0.0
  %603 = vmatprep.subr.mxu0 0.0
  %604 = vmatpush1.msra.mxu0 0.0
  %605 = vmatprep.subr.mxu0 0.0
  %606 = vmatpush1.msra.mxu0 0.0
  %607 = vmatprep.subr.mxu0 0.0
  %608 = vmatpush1.msra.mxu0 0.0
  %609 = vmatprep.subr.mxu0 0.0
  %610 = vmatpush1.msra.mxu0 0.0
  %611 = vmatprep.subr.mxu0 0.0
  %612 = vmatpush1.msra.mxu0 0.0
  %613 = vmatprep.subr.mxu0 0.0
  %614 = vmatpush1.msra.mxu0 0.0
  %615 = vmatprep.subr.mxu0 0.0
  %616 = vmatpush1.msra.mxu0 0.0
  %617 = vmatprep.subr.mxu0 0.0
  %618 = vmatpush1.msra.mxu0 0.0
  %619 = vmatprep.subr.mxu0 0.0
  %620 = vmatpush1.msra.mxu0 0.0
  %621 = vmatprep.subr.mxu0 0.0
  %622 = vmatpush1.msra.mxu0 0.0
  %623 = vmatprep.subr.mxu0 0.0
  %624 = vmatpush1.msra.mxu0 0.0
  %625 = vmatprep.subr.mxu0 0.0
  %626 = vmatpush1.msra.mxu0 0.0
  %627 = vmatprep.subr.mxu0 0.0
  %628 = vmatpush1.msra.mxu0 0.0
  %629 = vmatprep.mubr.f32.mxu0 0.0
  %630 = vmatmul.mubr.f32.gmra.mrb[0].mxu0 %v559
  %v631 = vpop.f32.mrb[0].mxu0
  %v632 = vadd.f32 0.0, %v631
  %v633 = vpop.f32.mrb[0].mxu0
  %634 = vdwg.mxu0
  %v635 = vmul.f32 %v462, %v632
  %v638 = vcombine.low %v635, %v466
  %v640 = vunpack.c.l.s4 1983009808
  %v641 = vunpack.c.0.s8 %v640
  %v642 = vlaneseq
  %v643 = vshrl.u32 %v642, 7
  %v644 = vsub.s32 %v641, %v643
  %v645 = vrot.slane %v638, %v644
  %647 = vst [vmem:[%s10] sm:$0xf] %v645
  %v648 = vmul.f32 %v466, 1.442695
  %v649 = vpow.pop %v648
  %v650 = vrot.slane %v635, 6
  %v652 = vrot.slane %v635, 4
  %v654 = vrot.slane %v635, 2
  %vm656 = vcmask 1041408
  %v657 = vsel %vm656, %v635, %v650
  %vm658 = vcmask 1043456
  %v659 = vsel %vm658, %v657, %v652
  %v660 = vsel %vm561, %v659, %v654
  %v662 = vrot.slane %v649, 6
  %v664 = vrot.slane %v649, 4
  %v666 = vrot.slane %v649, 2
  %v668 = vsel %vm656, %v649, %v662
  %v669 = vsel %vm658, %v668, %v664
  %v670 = vsel %vm561, %v669, %v666
  %v671 = vld [vmem:[%s9] sm:$0xff]
  %v672 = vld [vmem:[%s9 + $0x8] sm:$0x3f]
  %v673 = vmul.f32 %v671, %v670
  %v674 = vmul.f32 %v672, %v669
  %v675 = vadd.f32 %v660, %v673
  %v676 = vadd.f32 %v659, %v674
  %677 = vst [vmem:[%s11] sm:$0xff] %v675
  %678 = vst [vmem:[%s11 + $0x8] sm:$0x3f] %v676
  %v679 = vld [vmem:[%s8] sm:$0x1]
  %v681 = vlaneseq
  %v682 = vshrl.u32 %v681, 7
  %v683 = vsub.s32 0, %v682
  %v684 = vrot.slane %v679, %v683
  %v686 = vsub.f32 %v675, %v684
  %v687 = vsub.f32 %v676, %v684
  %v688 = vmul.f32 %v686, %v686
  %v689 = vmul.f32 %v687, %v687
  %690 = vmatprep.subr.mxu0 0.0
  %691 = vmatpush1.msra.mxu0 %v467
  %692 = vmatprep.subr.mxu0 0.0
  %693 = vmatpush1.msra.mxu0 %v468
  %694 = vmatprep.subr.mxu0 0.0
  %695 = vmatpush1.msra.mxu0 %v469
  %696 = vmatprep.subr.mxu0 0.0
  %697 = vmatpush1.msra.mxu0 %v470
  %698 = vmatprep.subr.mxu0 0.0
  %699 = vmatpush1.msra.mxu0 %v471
  %700 = vmatprep.subr.mxu0 0.0
  %701 = vmatpush1.msra.mxu0 %v472
  %702 = vmatprep.subr.mxu0 0.0
  %703 = vmatpush1.msra.mxu0 %v473
  %704 = vmatprep.subr.mxu0 0.0
  %705 = vmatpush1.msra.mxu0 %v474
  %706 = vmatprep.subr.mxu0 0.0
  %707 = vmatpush1.msra.mxu0 %v475
  %708 = vmatprep.subr.mxu0 0.0
  %709 = vmatpush1.msra.mxu0 %v476
  %710 = vmatprep.subr.mxu0 0.0
  %711 = vmatpush1.msra.mxu0 %v477
  %712 = vmatprep.subr.mxu0 0.0
  %713 = vmatpush1.msra.mxu0 %v478
  %714 = vmatprep.subr.mxu0 0.0
  %715 = vmatpush1.msra.mxu0 %v479
  %716 = vmatprep.subr.mxu0 0.0
  %717 = vmatpush1.msra.mxu0 %v480
  %718 = vmatprep.subr.mxu0 0.0
  %719 = vmatpush1.msra.mxu0 %v481
  %720 = vmatprep.subr.mxu0 0.0
  %721 = vmatpush1.msra.mxu0 %v482
  %722 = vmatprep.subr.mxu0 0.0
  %723 = vmatpush1.msra.mxu0 0.0
  %724 = vmatprep.subr.mxu0 0.0
  %725 = vmatpush1.msra.mxu0 0.0
  %726 = vmatprep.subr.mxu0 0.0
  %727 = vmatpush1.msra.mxu0 0.0
  %728 = vmatprep.subr.mxu0 0.0
  %729 = vmatpush1.msra.mxu0 0.0
  %730 = vmatprep.subr.mxu0 0.0
  %731 = vmatpush1.msra.mxu0 0.0
  %732 = vmatprep.subr.mxu0 0.0
  %733 = vmatpush1.msra.mxu0 0.0
  %734 = vmatprep.subr.mxu0 0.0
  %735 = vmatpush1.msra.mxu0 0.0
  %736 = vmatprep.subr.mxu0 0.0
  %737 = vmatpush1.msra.mxu0 0.0
  %738 = vmatprep.subr.mxu0 0.0
  %739 = vmatpush1.msra.mxu0 0.0
  %740 = vmatprep.subr.mxu0 0.0
  %741 = vmatpush1.msra.mxu0 0.0
  %742 = vmatprep.subr.mxu0 0.0
  %743 = vmatpush1.msra.mxu0 0.0
  %744 = vmatprep.subr.mxu0 0.0
  %745 = vmatpush1.msra.mxu0 0.0
  %746 = vmatprep.subr.mxu0 0.0
  %747 = vmatpush1.msra.mxu0 0.0
  %748 = vmatprep.subr.mxu0 0.0
  %749 = vmatpush1.msra.mxu0 0.0
  %750 = vmatprep.subr.mxu0 0.0
  %751 = vmatpush1.msra.mxu0 0.0
  %752 = vmatprep.subr.mxu0 0.0
  %753 = vmatpush1.msra.mxu0 0.0
  %754 = vmatprep.mubr.f32.mxu0 0.0
  %755 = vmatmul.mubr.f32.gmra.mrb[0].mxu0 %v688
  %v756 = vpop.f32.mrb[0].mxu0
  %v757 = vadd.f32 1e-06, %v756
  %v758 = vpop.f32.mrb[0].mxu0
  %759 = vmatprep.mubr.f32.mxu0 0.0
  %760 = vmatmul.mubr.f32.gmra.mrb[0].mxu0 %v689
  %v761 = vpop.f32.mrb[0].mxu0
  %v762 = vadd.f32 1e-06, %v761
  %v763 = vpop.f32.mrb[0].mxu0
  %764 = vdwg.mxu0
  %v765 = vrsqrt.pop %v757
  %v766 = vmul.f32 %v757, %v765
  %vm767 = vcmp.eq.f32.partialorder %v757, inf
  %v768 = vsel %vm767, %v757, %v766
  %vm769 = vcmp.eq.f32.partialorder %v757, 0.0
  %v770 = vand.u32 %v757, 2147483648
  %v771 = vsel %vm769, %v770, %v768
  %v772 = vrsqrt.pop %v762
  %v773 = vmul.f32 %v762, %v772
  %vm774 = vcmp.eq.f32.partialorder %v762, inf
  %v775 = vsel %vm774, %v762, %v773
  %vm776 = vcmp.eq.f32.partialorder %v762, 0.0
  %v777 = vand.u32 %v762, 2147483648
  %v778 = vsel %vm776, %v777, %v775
  %s779 = sld [smem:[#allocation2]]
  %s780 = sld [smem:[#allocation3]]
  %s781 = ssub.f32 0.0, %s779
  %v782 = vstv %s781
  %v783 = vmul.f32 %v782, %v771
  %v784 = vmul.f32 %v782, %v778
  %v785 = vstv %s780
  %v786 = vadd.f32 %v783, %v785
  %v787 = vadd.f32 %v784, %v785
  %v788 = vmul.f32 %v786, -2.0
  %v789 = vmul.f32 %v787, -2.0
  %v790 = vmul.f32 %v788, 1.442695
  %v791 = vpow.pop %v790
  %v792 = vmul.f32 %v789, 1.442695
  %v793 = vpow.pop %v792
  %v794 = vadd.f32 %v791, 1.0
  %v795 = vadd.f32 %v793, 1.0
  %v796 = vrcp.pop %v794
  %v797 = vmul.f32 1.0, %v796
  %v798 = vrcp.pop %v795
  %v799 = vmul.f32 1.0, %v798
  %v801 = vrot.slane %v786, 2
  %v803 = vadd.f32 %v786, %v801
  %v804 = vrot.slane %v786, 4
  %v806 = vadd.f32 %v803, %v804
  %v807 = vrot.slane %v786, 6
  %v809 = vadd.f32 %v806, %v807
  %v810 = vadd.f32 %v809, %v787
  %v812 = vrot.slane %v787, 2
  %v814 = vadd.f32 %v810, %v812
  %v815 = vrot.slane %v787, 4
  %v817 = vadd.f32 %v814, %v815
  %v818 = vmul.f32 %v817, 0.14285715
  %v820 = vrot.slane %v797, 2
  %v822 = vadd.f32 %v797, %v820
  %v823 = vrot.slane %v797, 4
  %v825 = vadd.f32 %v822, %v823
  %v826 = vrot.slane %v797, 6
  %v828 = vadd.f32 %v825, %v826
  %v829 = vadd.f32 %v828, %v799
  %v831 = vrot.slane %v799, 2
  %v833 = vadd.f32 %v829, %v831
  %v834 = vrot.slane %v799, 4
  %v836 = vadd.f32 %v833, %v834
  %v837 = vmul.f32 %v836, 0.14285715
  %838 = vmatprep.subr.mxu0 0.0
  %839 = vmatpush1.msra.mxu0 %v467
  %840 = vmatprep.subr.mxu0 0.0
  %841 = vmatpush1.msra.mxu0 %v468
  %842 = vmatprep.subr.mxu0 0.0
  %843 = vmatpush1.msra.mxu0 %v469
  %844 = vmatprep.subr.mxu0 0.0
  %845 = vmatpush1.msra.mxu0 %v470
  %846 = vmatprep.subr.mxu0 0.0
  %847 = vmatpush1.msra.mxu0 %v471
  %848 = vmatprep.subr.mxu0 0.0
  %849 = vmatpush1.msra.mxu0 %v472
  %850 = vmatprep.subr.mxu0 0.0
  %851 = vmatpush1.msra.mxu0 %v473
  %852 = vmatprep.subr.mxu0 0.0
  %853 = vmatpush1.msra.mxu0 %v474
  %854 = vmatprep.subr.mxu0 0.0
  %855 = vmatpush1.msra.mxu0 %v475
  %856 = vmatprep.subr.mxu0 0.0
  %857 = vmatpush1.msra.mxu0 %v476
  %858 = vmatprep.subr.mxu0 0.0
  %859 = vmatpush1.msra.mxu0 %v477
  %860 = vmatprep.subr.mxu0 0.0
  %861 = vmatpush1.msra.mxu0 %v478
  %862 = vmatprep.subr.mxu0 0.0
  %863 = vmatpush1.msra.mxu0 %v479
  %864 = vmatprep.subr.mxu0 0.0
  %865 = vmatpush1.msra.mxu0 %v480
  %866 = vmatprep.subr.mxu0 0.0
  %867 = vmatpush1.msra.mxu0 %v481
  %868 = vmatprep.subr.mxu0 0.0
  %869 = vmatpush1.msra.mxu0 %v482
  %870 = vmatprep.subr.mxu0 0.0
  %871 = vmatpush1.msra.mxu0 0.0
  %872 = vmatprep.subr.mxu0 0.0
  %873 = vmatpush1.msra.mxu0 0.0
  %874 = vmatprep.subr.mxu0 0.0
  %875 = vmatpush1.msra.mxu0 0.0
  %876 = vmatprep.subr.mxu0 0.0
  %877 = vmatpush1.msra.mxu0 0.0
  %878 = vmatprep.subr.mxu0 0.0
  %879 = vmatpush1.msra.mxu0 0.0
  %880 = vmatprep.subr.mxu0 0.0
  %881 = vmatpush1.msra.mxu0 0.0
  %882 = vmatprep.subr.mxu0 0.0
  %883 = vmatpush1.msra.mxu0 0.0
  %884 = vmatprep.subr.mxu0 0.0
  %885 = vmatpush1.msra.mxu0 0.0
  %886 = vmatprep.subr.mxu0 0.0
  %887 = vmatpush1.msra.mxu0 0.0
  %888 = vmatprep.subr.mxu0 0.0
  %889 = vmatpush1.msra.mxu0 0.0
  %890 = vmatprep.subr.mxu0 0.0
  %891 = vmatpush1.msra.mxu0 0.0
  %892 = vmatprep.subr.mxu0 0.0
  %893 = vmatpush1.msra.mxu0 0.0
  %894 = vmatprep.subr.mxu0 0.0
  %895 = vmatpush1.msra.mxu0 0.0
  %896 = vmatprep.subr.mxu0 0.0
  %897 = vmatpush1.msra.mxu0 0.0
  %898 = vmatprep.subr.mxu0 0.0
  %899 = vmatpush1.msra.mxu0 0.0
  %900 = vmatprep.subr.mxu0 0.0
  %901 = vmatpush1.msra.mxu0 0.0
  %902 = vmatprep.mubr.f32.mxu0 0.0
  %903 = vmatmul.mubr.f32.gmra.mrb[0].mxu0 %v466
  %v904 = vpop.f32.mrb[0].mxu0
  %v905 = vadd.f32 0.0, %v904
  %v906 = vpop.f32.mrb[0].mxu0
  %907 = vdwg.mxu0
  %v908 = vmul.f32 %v905, 0.0625
  %v909 = vmul.f32 %v908, 1.442695
  %v910 = vpow.pop %v909
  %912 = vrot.lane.b32.xlu0 %v837, 6
  %v913 = vpop.permute.xlu0 %912
  %916 = vrot.lane.b32.xlu0 %v910, 12
  %v917 = vpop.permute.xlu0 %916
  %v919 = vsel %vm557, %v818, %v913
  %vm920 = vcmask 97280
  %v921 = vsel %vm920, %v919, %v917
  %vm922 = vcmask 146432
  %v923 = vsel %vm922, %v921, 0.0
  %924 = vst [vmem:[%s12] sm:$0x3] %v923
  // Predicated region
  $region42: #{prob_concept_forward.1} parent=0 // pred_check
    _
  $region43: #{prob_concept_forward.1} parent=0 // pred_check_branch
    %926 = sbr.rel (0) target = $region45
  $region44: #{prob_concept_forward.1} parent=0 // pred_region
    _
  $region45: #{prob_concept_forward.1} parent=0 // pred_fallthru
    _
  // Predicated region
  $region46: #{prob_concept_forward.1} parent=0 // pred_check
    _
  $region47: #{prob_concept_forward.1} parent=0 // pred_check_branch
    %928 = sbr.rel (0) target = $region49
  $region48: #{prob_concept_forward.1} parent=0 // pred_region
    _
  $region49: #{prob_concept_forward.1} parent=0 // pred_fallthru
    _
  // Predicated region
  $region50: #{prob_concept_forward.1} parent=0 // pred_check
    _
  $region51: #{prob_concept_forward.1} parent=0 // pred_check_branch
    %930 = sbr.rel (0) target = $region53
  $region52: #{prob_concept_forward.1} parent=0 // pred_region
    _
  $region53: #{prob_concept_forward.1} parent=0 // pred_fallthru
    _
  // Predicated region
  $region54: #{prob_concept_forward.1} parent=0 // pred_check
    _
  $region55: #{prob_concept_forward.1} parent=0 // pred_check_branch
    %932 = sbr.rel (0) target = $region57
  $region56: #{prob_concept_forward.1} parent=0 // pred_region
    _
  $region57: #{prob_concept_forward.1} parent=0 // pred_fallthru
    _
  // Predicated region
  $region58: #{prob_concept_forward.1} parent=0 // pred_check
    _
  $region59: #{prob_concept_forward.1} parent=0 // pred_check_branch
    %934 = sbr.rel (0) target = $region61
  $region60: #{prob_concept_forward.1} parent=0 // pred_region
    _
  $region61: #{prob_concept_forward.1} parent=0 // pred_fallthru
    _
  // Predicated region
  $region62: #{prob_concept_forward.1} parent=0 // pred_check
    _
  $region63: #{prob_concept_forward.1} parent=0 // pred_check_branch
    %936 = sbr.rel (0) target = $region65
  $region64: #{prob_concept_forward.1} parent=0 // pred_region
    _
  $region65: #{prob_concept_forward.1} parent=0 // pred_fallthru
    _

</llo_original>
